<compile_context>
chip_gen: v6e
topology: v6e:2x2x1
jax: 0.10.0
libtpu: 0.0.40
codegen_flags: <defaults>
</compile_context>

<pallas_src>
import functools
from typing import Dict

import jax
import jax.numpy as jnp
from jax.experimental import pallas as pl
from jax.experimental.pallas import tpu as pltpu


LANE = 128     # lane width (last dim)
SUBLANE = 8    # sublane tile (second-to-last dim, f32)


def _round_up(x: int, m: int) -> int:
    return (x + m - 1) // m * m


# ----------------------------- Pallas kernel --------------------------------

def _fused_conv_pool_fc_kernel(x_ref, w_ref, b_ref, wc_ref, bc_ref,
                               logits_ref, feat_ref,
                               *, tile_h, W, Cp, Cf, NC, inv_hw):
    """Fused 3x3 conv + bias + ReLU + global-avg-pool + Linear head.

    x_ref:      (1, H+2, W+2, Cp)  padded NHWC sample, bf16 (resident over r)
    w_ref:      (9, Cp, Cf)        conv weight per 3x3 tap, bf16
    b_ref:      (1, Cf)            conv bias, f32
    wc_ref:     (Cf, NC)           classifier weight, f32
    bc_ref:     (1, NC)            classifier bias, f32
    logits_ref: (1, 1, NC)         per-sample logits (written on last r only)
    feat_ref:   (1, 1, Cf)         per-sample pooled features (accumulator)
    """
    r = pl.program_id(1)

    @pl.when(r == 0)
    def _init():
        feat_ref[...] = jnp.zeros_like(feat_ref)

    row0 = pl.multiple_of(r * tile_h, tile_h)

    # 3x3 conv over this row tile: 9 shifted (tile_h*W, Cp) x (Cp, Cf) bf16
    # dots, accumulated in f32 (MXU, f32 accumulate).
    acc = jnp.zeros((tile_h * W, Cf), jnp.float32)
    for kh in range(3):
        for kw in range(3):
            xt = x_ref[0, pl.ds(row0 + kh, tile_h), pl.ds(kw, W), :]
            acc = acc + jnp.dot(xt.reshape(tile_h * W, Cp),
                                w_ref[kh * 3 + kw],
                                preferred_element_type=jnp.float32)
    acc = jnp.maximum(acc + b_ref[...], 0.0)                 # bias + ReLU

    # Partial global-average-pool: accumulate row-tile channel sums into the
    # resident feature-output block (AdaptiveAvgPool2d((1,1)) + Flatten hook).
    feat_ref[...] += jnp.sum(acc, axis=0, keepdims=True).reshape(1, 1, Cf)

    @pl.when(r == pl.num_programs(1) - 1)
    def _finalize():
        pooled = feat_ref[...].reshape(1, Cf) * inv_hw       # sum -> mean
        feat_ref[...] = pooled.reshape(1, 1, Cf)
        logits = jnp.dot(pooled, wc_ref[...],
                         preferred_element_type=jnp.float32) + bc_ref[...]
        logits_ref[...] = logits.reshape(1, 1, NC)


# ------------------------------ JAX wrapper ----------------------------------

def fused_conv_pool_fc(x_nchw, conv_w, conv_b, fc_w, fc_b, *, tile_h=8):
    """Fused backbone + hook + head.  Returns (logits (N, NC), features (N, Cf))."""
    N, C, H, W = x_nchw.shape
    Cf = conv_w.shape[0]
    NC = fc_w.shape[1]
    assert H % tile_h == 0, "tile_h must divide H"

    Cp = _round_up(C, SUBLANE)        # sublane-aligned contraction dim
    Cf_pad = _round_up(Cf, LANE)      # lane-dense feature channels
    NC_pad = _round_up(NC, LANE)      # lane-dense logits

    # Single cheap relayout: NCHW -> NHWC, zero halo pad (3x3 SAME) + channel
    # pad; bf16 activations.  No im2col materialization in the wrapper.
    x = jnp.transpose(x_nchw, (0, 2, 3, 1))
    x = jnp.pad(x, ((0, 0), (1, 1), (1, 1), (0, Cp - C))).astype(jnp.bfloat16)

    # Conv weight (Cf, C, 3, 3) -> (9, Cp, Cf_pad), tap-major, bf16.
    w = jnp.transpose(conv_w, (2, 3, 1, 0)).reshape(9, C, Cf)
    w = jnp.pad(w, ((0, 0), (0, Cp - C), (0, Cf_pad - Cf))).astype(jnp.bfloat16)
    b = jnp.pad(conv_b, (0, Cf_pad - Cf)).reshape(1, Cf_pad).astype(jnp.float32)

    wc = jnp.pad(fc_w, ((0, Cf_pad - Cf), (0, NC_pad - NC))).astype(jnp.float32)
    bc = jnp.pad(fc_b, (0, NC_pad - NC)).reshape(1, NC_pad).astype(jnp.float32)

    Hp, Wp = H + 2, W + 2
    grid = (N, H // tile_h)

    kernel = functools.partial(
        _fused_conv_pool_fc_kernel,
        tile_h=tile_h, W=W, Cp=Cp, Cf=Cf_pad, NC=NC_pad, inv_hw=1.0 / (H * W))

    logits_p, feats_p = pl.pallas_call(
        kernel,
        out_shape=(
            jax.ShapeDtypeStruct((N, 1, NC_pad), jnp.float32),
            jax.ShapeDtypeStruct((N, 1, Cf_pad), jnp.float32),
        ),
        grid_spec=pltpu.PrefetchScalarGridSpec(
            num_scalar_prefetch=0,
            grid=grid,
            in_specs=[
                # padded sample: block index constant over r -> DMA'd once per n
                pl.BlockSpec((1, Hp, Wp, Cp), lambda n, r: (n, 0, 0, 0)),
                pl.BlockSpec((9, Cp, Cf_pad), lambda n, r: (0, 0, 0)),
                pl.BlockSpec((1, Cf_pad), lambda n, r: (0, 0)),
                pl.BlockSpec((Cf_pad, NC_pad), lambda n, r: (0, 0)),
                pl.BlockSpec((1, NC_pad), lambda n, r: (0, 0)),
            ],
            out_specs=(
                pl.BlockSpec((1, 1, NC_pad), lambda n, r: (n, 0, 0)),
                pl.BlockSpec((1, 1, Cf_pad), lambda n, r: (n, 0, 0)),
            ),
        ),
        compiler_params=pltpu.CompilerParams(
            dimension_semantics=("parallel", "arbitrary")),
    )(x, w, b, wc, bc)

    # Strip lane padding (padded channels/classes are exactly zero).
    return logits_p[:, 0, :NC], feats_p[:, 0, :Cf]


class BaseTimmModelPallas:
    """Pallas equivalent of BaseTimmModel's forward:
       outputs = model(x); features = Flatten(AdaptiveAvgPool2d((1,1))(fmap))."""

    def __init__(self, in_channels: int, feature_dim: int, num_classes: int,
                 key: jax.Array, tile_h: int = 8):
        self.num_classes = num_classes
        self.feature_dim = feature_dim
        k1, k2, k3, k4 = jax.random.split(key, 4)
        # backbone conv: (C_out, C_in, 3, 3) -- PyTorch conv weight layout
        self.conv_w = 0.1 * jax.random.normal(
            k1, (feature_dim, in_channels, 3, 3), jnp.float32)
        self.conv_b = 0.1 * jax.random.normal(k2, (feature_dim,), jnp.float32)
        # classifier head: Linear(feature_dim -> num_classes)
        self.fc_w = 0.1 * jax.random.normal(
            k3, (feature_dim, num_classes), jnp.float32)
        self.fc_b = 0.1 * jax.random.normal(k4, (num_classes,), jnp.float32)
        self._fwd = jax.jit(functools.partial(fused_conv_pool_fc, tile_h=tile_h))

    def forward(self, batch: Dict) -> Dict:
        x = batch['inputs']                               # NCHW float32
        logits, features = self._fwd(x, self.conv_w, self.conv_b,
                                     self.fc_w, self.fc_b)
        # num_classes > 0 path: features come from the forward_features hook
        return {'outputs': logits, 'features': features}

    # TODO(synk): get_prediction (argmax / thresholding / classname mapping) is
    # host-side post-processing, not part of the kernel hot path.


# --------------------------------- main ---------------------------------------

if __name__ == "__main__":
    key = jax.random.PRNGKey(0)
    k_in, k_model = jax.random.split(key)

    N, C, H, W = 2, 4, 16, 16
    feature_dim, num_classes = 32, 8

    x = jax.random.normal(k_in, (N, C, H, W), jnp.float32)
    model = BaseTimmModelPallas(C, feature_dim, num_classes, k_model, tile_h=8)

    out = model.forward({'inputs': x})
    logits = jax.block_until_ready(out['outputs'])
    feats = jax.block_until_ready(out['features'])

    # pure-JAX reference, using the same bf16-rounded conv operands as the kernel
    xq = x.astype(jnp.bfloat16).astype(jnp.float32)
    wq = model.conv_w.astype(jnp.bfloat16).astype(jnp.float32)
    fmap_ref = jax.lax.conv_general_dilated(
        xq, wq, (1, 1), 'SAME',
        dimension_numbers=('NCHW', 'OIHW', 'NCHW'),
        precision=jax.lax.Precision.HIGHEST)
    fmap_ref = jnp.maximum(fmap_ref + model.conv_b[None, :, None, None], 0.0)
    feats_ref = jnp.mean(fmap_ref, axis=(2, 3))
    logits_ref = jnp.dot(feats_ref, model.fc_w,
                         precision=jax.lax.Precision.HIGHEST) + model.fc_b

    assert logits.shape == (N, num_classes)
    assert feats.shape == (N, feature_dim)
    assert jnp.allclose(feats, feats_ref, atol=2e-3, rtol=2e-3), \
        float(jnp.max(jnp.abs(feats - feats_ref)))
    assert jnp.allclose(logits, logits_ref, atol=2e-3, rtol=2e-3), \
        float(jnp.max(jnp.abs(logits - logits_ref)))

    print("KERNEL_OK")
</pallas_src>

<mosaic_0001>
module attributes {stable_mosaic.version = 11 : i64} {
  func.func @_fused_conv_pool_fc_kernel(%arg0: i32, %arg1: i32, %arg2: memref<1x18x18x8xbf16, #tpu.memory_space<vmem>>, %arg3: memref<9x8x128xbf16, #tpu.memory_space<vmem>>, %arg4: memref<1x128xf32, #tpu.memory_space<vmem>>, %arg5: memref<128x128xf32, #tpu.memory_space<vmem>>, %arg6: memref<1x128xf32, #tpu.memory_space<vmem>>, %arg7: memref<1x1x128xf32, #tpu.memory_space<vmem>>, %arg8: memref<1x1x128xf32, #tpu.memory_space<vmem>>) attributes {dimension_semantics = [#tpu.dimension_semantics<parallel>, #tpu.dimension_semantics<arbitrary>], iteration_bounds = array<i64: 2, 2>, scalar_prefetch = 0 : i64, scratch_operands = 0 : i64, tpu.core_type = #tpu.core_type<tc>, window_params = [{transform_indices = @transform_0, window_bounds = array<i64: 1, 18, 18, 8>}, {pipeline_mode = #tpu.pipeline_mode<synchronous>, transform_indices = @transform_1, window_bounds = array<i64: 9, 8, 128>}, {pipeline_mode = #tpu.pipeline_mode<synchronous>, transform_indices = @transform_2, window_bounds = array<i64: 1, 128>}, {pipeline_mode = #tpu.pipeline_mode<synchronous>, transform_indices = @transform_3, window_bounds = array<i64: 128, 128>}, {pipeline_mode = #tpu.pipeline_mode<synchronous>, transform_indices = @transform_4, window_bounds = array<i64: 1, 128>}, {transform_indices = @transform_5, window_bounds = array<i64: 1, 1, 128>}, {transform_indices = @transform_6, window_bounds = array<i64: 1, 1, 128>}]} {
    %c0_i32 = arith.constant 0 : i32
    %0 = arith.cmpi eq, %arg1, %c0_i32 : i32
    %1 = arith.extui %0 : i1 to i32
    %c0_i32_0 = arith.constant 0 : i32
    %2 = arith.cmpi ne, %1, %c0_i32_0 : i32
    scf.if %2 {
      %cst_74 = arith.constant 0.000000e+00 : f32
      %101 = vector.broadcast %cst_74 : f32 to vector<1x1x128xf32>
      %c0_75 = arith.constant 0 : index
      %c0_76 = arith.constant 0 : index
      %c0_77 = arith.constant 0 : index
      %102 = vector.load %arg8[%c0_75, %c0_76, %c0_77] : memref<1x1x128xf32, #tpu.memory_space<vmem>>, vector<1x1x128xf32>
      tpu.vector_store %arg8[%c0_75, %c0_76, %c0_77], %101 {strides = array<i32>} : memref<1x1x128xf32, #tpu.memory_space<vmem>>, vector<1x1x128xf32>,
    } else {
    }
    %c8_i32 = arith.constant 8 : i32
    %3 = arith.muli %arg1, %c8_i32 : i32
    %4 = tpu.assume_multiple %3, 8 : i32
    %cst = arith.constant 0.000000e+00 : f32
    %5 = vector.broadcast %cst : f32 to vector<128x128xf32>
    %c0_i32_1 = arith.constant 0 : i32
    %6 = arith.addi %4, %c0_i32_1 : i32
    %c0 = arith.constant 0 : index
    %7 = arith.index_cast %6 : i32 to index
    %c0_2 = arith.constant 0 : index
    %c0_3 = arith.constant 0 : index
    %8 = vector.load %arg2[%c0, %7, %c0_2, %c0_3] : memref<1x18x18x8xbf16, #tpu.memory_space<vmem>>, vector<1x8x16x8xbf16>
    %9 = vector.shape_cast %8 : vector<1x8x16x8xbf16> to vector<8x16x8xbf16>
    %10 = vector.shape_cast %9 : vector<8x16x8xbf16> to vector<128x8xbf16>
    %c0_4 = arith.constant 0 : index
    %c0_5 = arith.constant 0 : index
    %c0_6 = arith.constant 0 : index
    %11 = vector.load %arg3[%c0_4, %c0_5, %c0_6] : memref<9x8x128xbf16, #tpu.memory_space<vmem>>, vector<1x8x128xbf16>
    %12 = vector.shape_cast %11 : vector<1x8x128xbf16> to vector<8x128xbf16>
    %cst_7 = arith.constant dense<0.000000e+00> : vector<128x128xf32>
    %13 = tpu.matmul %10, %12, %cst_7 {dimension_numbers = #tpu.dot_dimension_numbers<[1], [0], [0], [1], [0, 0, 1, 1], [], []>} : vector<128x8xbf16>, vector<8x128xbf16>, vector<128x128xf32> -> vector<128x128xf32>
    %14 = arith.addf %5, %13 : vector<128x128xf32>
    %c0_i32_8 = arith.constant 0 : i32
    %15 = arith.addi %4, %c0_i32_8 : i32
    %c0_9 = arith.constant 0 : index
    %16 = arith.index_cast %15 : i32 to index
    %c1 = arith.constant 1 : index
    %c0_10 = arith.constant 0 : index
    %17 = vector.load %arg2[%c0_9, %16, %c1, %c0_10] : memref<1x18x18x8xbf16, #tpu.memory_space<vmem>>, vector<1x8x16x8xbf16>
    %18 = vector.shape_cast %17 : vector<1x8x16x8xbf16> to vector<8x16x8xbf16>
    %19 = vector.shape_cast %18 : vector<8x16x8xbf16> to vector<128x8xbf16>
    %c1_11 = arith.constant 1 : index
    %c0_12 = arith.constant 0 : index
    %c0_13 = arith.constant 0 : index
    %20 = vector.load %arg3[%c1_11, %c0_12, %c0_13] : memref<9x8x128xbf16, #tpu.memory_space<vmem>>, vector<1x8x128xbf16>
    %21 = vector.shape_cast %20 : vector<1x8x128xbf16> to vector<8x128xbf16>
    %cst_14 = arith.constant dense<0.000000e+00> : vector<128x128xf32>
    %22 = tpu.matmul %19, %21, %cst_14 {dimension_numbers = #tpu.dot_dimension_numbers<[1], [0], [0], [1], [0, 0, 1, 1], [], []>} : vector<128x8xbf16>, vector<8x128xbf16>, vector<128x128xf32> -> vector<128x128xf32>
    %23 = arith.addf %14, %22 : vector<128x128xf32>
    %c0_i32_15 = arith.constant 0 : i32
    %24 = arith.addi %4, %c0_i32_15 : i32
    %c0_16 = arith.constant 0 : index
    %25 = arith.index_cast %24 : i32 to index
    %c2 = arith.constant 2 : index
    %c0_17 = arith.constant 0 : index
    %26 = vector.load %arg2[%c0_16, %25, %c2, %c0_17] : memref<1x18x18x8xbf16, #tpu.memory_space<vmem>>, vector<1x8x16x8xbf16>
    %27 = vector.shape_cast %26 : vector<1x8x16x8xbf16> to vector<8x16x8xbf16>
    %28 = vector.shape_cast %27 : vector<8x16x8xbf16> to vector<128x8xbf16>
    %c2_18 = arith.constant 2 : index
    %c0_19 = arith.constant 0 : index
    %c0_20 = arith.constant 0 : index
    %29 = vector.load %arg3[%c2_18, %c0_19, %c0_20] : memref<9x8x128xbf16, #tpu.memory_space<vmem>>, vector<1x8x128xbf16>
    %30 = vector.shape_cast %29 : vector<1x8x128xbf16> to vector<8x128xbf16>
    %cst_21 = arith.constant dense<0.000000e+00> : vector<128x128xf32>
    %31 = tpu.matmul %28, %30, %cst_21 {dimension_numbers = #tpu.dot_dimension_numbers<[1], [0], [0], [1], [0, 0, 1, 1], [], []>} : vector<128x8xbf16>, vector<8x128xbf16>, vector<128x128xf32> -> vector<128x128xf32>
    %32 = arith.addf %23, %31 : vector<128x128xf32>
    %c1_i32 = arith.constant 1 : i32
    %33 = arith.addi %4, %c1_i32 : i32
    %c0_22 = arith.constant 0 : index
    %34 = arith.index_cast %33 : i32 to index
    %c0_23 = arith.constant 0 : index
    %c0_24 = arith.constant 0 : index
    %35 = vector.load %arg2[%c0_22, %34, %c0_23, %c0_24] : memref<1x18x18x8xbf16, #tpu.memory_space<vmem>>, vector<1x8x16x8xbf16>
    %36 = vector.shape_cast %35 : vector<1x8x16x8xbf16> to vector<8x16x8xbf16>
    %37 = vector.shape_cast %36 : vector<8x16x8xbf16> to vector<128x8xbf16>
    %c3 = arith.constant 3 : index
    %c0_25 = arith.constant 0 : index
    %c0_26 = arith.constant 0 : index
    %38 = vector.load %arg3[%c3, %c0_25, %c0_26] : memref<9x8x128xbf16, #tpu.memory_space<vmem>>, vector<1x8x128xbf16>
    %39 = vector.shape_cast %38 : vector<1x8x128xbf16> to vector<8x128xbf16>
    %cst_27 = arith.constant dense<0.000000e+00> : vector<128x128xf32>
    %40 = tpu.matmul %37, %39, %cst_27 {dimension_numbers = #tpu.dot_dimension_numbers<[1], [0], [0], [1], [0, 0, 1, 1], [], []>} : vector<128x8xbf16>, vector<8x128xbf16>, vector<128x128xf32> -> vector<128x128xf32>
    %41 = arith.addf %32, %40 : vector<128x128xf32>
    %c1_i32_28 = arith.constant 1 : i32
    %42 = arith.addi %4, %c1_i32_28 : i32
    %c0_29 = arith.constant 0 : index
    %43 = arith.index_cast %42 : i32 to index
    %c1_30 = arith.constant 1 : index
    %c0_31 = arith.constant 0 : index
    %44 = vector.load %arg2[%c0_29, %43, %c1_30, %c0_31] : memref<1x18x18x8xbf16, #tpu.memory_space<vmem>>, vector<1x8x16x8xbf16>
    %45 = vector.shape_cast %44 : vector<1x8x16x8xbf16> to vector<8x16x8xbf16>
    %46 = vector.shape_cast %45 : vector<8x16x8xbf16> to vector<128x8xbf16>
    %c4 = arith.constant 4 : index
    %c0_32 = arith.constant 0 : index
    %c0_33 = arith.constant 0 : index
    %47 = vector.load %arg3[%c4, %c0_32, %c0_33] : memref<9x8x128xbf16, #tpu.memory_space<vmem>>, vector<1x8x128xbf16>
    %48 = vector.shape_cast %47 : vector<1x8x128xbf16> to vector<8x128xbf16>
    %cst_34 = arith.constant dense<0.000000e+00> : vector<128x128xf32>
    %49 = tpu.matmul %46, %48, %cst_34 {dimension_numbers = #tpu.dot_dimension_numbers<[1], [0], [0], [1], [0, 0, 1, 1], [], []>} : vector<128x8xbf16>, vector<8x128xbf16>, vector<128x128xf32> -> vector<128x128xf32>
    %50 = arith.addf %41, %49 : vector<128x128xf32>
    %c1_i32_35 = arith.constant 1 : i32
    %51 = arith.addi %4, %c1_i32_35 : i32
    %c0_36 = arith.constant 0 : index
    %52 = arith.index_cast %51 : i32 to index
    %c2_37 = arith.constant 2 : index
    %c0_38 = arith.constant 0 : index
    %53 = vector.load %arg2[%c0_36, %52, %c2_37, %c0_38] : memref<1x18x18x8xbf16, #tpu.memory_space<vmem>>, vector<1x8x16x8xbf16>
    %54 = vector.shape_cast %53 : vector<1x8x16x8xbf16> to vector<8x16x8xbf16>
    %55 = vector.shape_cast %54 : vector<8x16x8xbf16> to vector<128x8xbf16>
    %c5 = arith.constant 5 : index
    %c0_39 = arith.constant 0 : index
    %c0_40 = arith.constant 0 : index
    %56 = vector.load %arg3[%c5, %c0_39, %c0_40] : memref<9x8x128xbf16, #tpu.memory_space<vmem>>, vector<1x8x128xbf16>
    %57 = vector.shape_cast %56 : vector<1x8x128xbf16> to vector<8x128xbf16>
    %cst_41 = arith.constant dense<0.000000e+00> : vector<128x128xf32>
    %58 = tpu.matmul %55, %57, %cst_41 {dimension_numbers = #tpu.dot_dimension_numbers<[1], [0], [0], [1], [0, 0, 1, 1], [], []>} : vector<128x8xbf16>, vector<8x128xbf16>, vector<128x128xf32> -> vector<128x128xf32>
    %59 = arith.addf %50, %58 : vector<128x128xf32>
    %c2_i32 = arith.constant 2 : i32
    %60 = arith.addi %4, %c2_i32 : i32
    %c0_42 = arith.constant 0 : index
    %61 = arith.index_cast %60 : i32 to index
    %c0_43 = arith.constant 0 : index
    %c0_44 = arith.constant 0 : index
    %62 = vector.load %arg2[%c0_42, %61, %c0_43, %c0_44] : memref<1x18x18x8xbf16, #tpu.memory_space<vmem>>, vector<1x8x16x8xbf16>
    %63 = vector.shape_cast %62 : vector<1x8x16x8xbf16> to vector<8x16x8xbf16>
    %64 = vector.shape_cast %63 : vector<8x16x8xbf16> to vector<128x8xbf16>
    %c6 = arith.constant 6 : index
    %c0_45 = arith.constant 0 : index
    %c0_46 = arith.constant 0 : index
    %65 = vector.load %arg3[%c6, %c0_45, %c0_46] : memref<9x8x128xbf16, #tpu.memory_space<vmem>>, vector<1x8x128xbf16>
    %66 = vector.shape_cast %65 : vector<1x8x128xbf16> to vector<8x128xbf16>
    %cst_47 = arith.constant dense<0.000000e+00> : vector<128x128xf32>
    %67 = tpu.matmul %64, %66, %cst_47 {dimension_numbers = #tpu.dot_dimension_numbers<[1], [0], [0], [1], [0, 0, 1, 1], [], []>} : vector<128x8xbf16>, vector<8x128xbf16>, vector<128x128xf32> -> vector<128x128xf32>
    %68 = arith.addf %59, %67 : vector<128x128xf32>
    %c2_i32_48 = arith.constant 2 : i32
    %69 = arith.addi %4, %c2_i32_48 : i32
    %c0_49 = arith.constant 0 : index
    %70 = arith.index_cast %69 : i32 to index
    %c1_50 = arith.constant 1 : index
    %c0_51 = arith.constant 0 : index
    %71 = vector.load %arg2[%c0_49, %70, %c1_50, %c0_51] : memref<1x18x18x8xbf16, #tpu.memory_space<vmem>>, vector<1x8x16x8xbf16>
    %72 = vector.shape_cast %71 : vector<1x8x16x8xbf16> to vector<8x16x8xbf16>
    %73 = vector.shape_cast %72 : vector<8x16x8xbf16> to vector<128x8xbf16>
    %c7 = arith.constant 7 : index
    %c0_52 = arith.constant 0 : index
    %c0_53 = arith.constant 0 : index
    %74 = vector.load %arg3[%c7, %c0_52, %c0_53] : memref<9x8x128xbf16, #tpu.memory_space<vmem>>, vector<1x8x128xbf16>
    %75 = vector.shape_cast %74 : vector<1x8x128xbf16> to vector<8x128xbf16>
    %cst_54 = arith.constant dense<0.000000e+00> : vector<128x128xf32>
    %76 = tpu.matmul %73, %75, %cst_54 {dimension_numbers = #tpu.dot_dimension_numbers<[1], [0], [0], [1], [0, 0, 1, 1], [], []>} : vector<128x8xbf16>, vector<8x128xbf16>, vector<128x128xf32> -> vector<128x128xf32>
    %77 = arith.addf %68, %76 : vector<128x128xf32>
    %c2_i32_55 = arith.constant 2 : i32
    %78 = arith.addi %4, %c2_i32_55 : i32
    %c0_56 = arith.constant 0 : index
    %79 = arith.index_cast %78 : i32 to index
    %c2_57 = arith.constant 2 : index
    %c0_58 = arith.constant 0 : index
    %80 = vector.load %arg2[%c0_56, %79, %c2_57, %c0_58] : memref<1x18x18x8xbf16, #tpu.memory_space<vmem>>, vector<1x8x16x8xbf16>
    %81 = vector.shape_cast %80 : vector<1x8x16x8xbf16> to vector<8x16x8xbf16>
    %82 = vector.shape_cast %81 : vector<8x16x8xbf16> to vector<128x8xbf16>
    %c8 = arith.constant 8 : index
    %c0_59 = arith.constant 0 : index
    %c0_60 = arith.constant 0 : index
    %83 = vector.load %arg3[%c8, %c0_59, %c0_60] : memref<9x8x128xbf16, #tpu.memory_space<vmem>>, vector<1x8x128xbf16>
    %84 = vector.shape_cast %83 : vector<1x8x128xbf16> to vector<8x128xbf16>
    %cst_61 = arith.constant dense<0.000000e+00> : vector<128x128xf32>
    %85 = tpu.matmul %82, %84, %cst_61 {dimension_numbers = #tpu.dot_dimension_numbers<[1], [0], [0], [1], [0, 0, 1, 1], [], []>} : vector<128x8xbf16>, vector<8x128xbf16>, vector<128x128xf32> -> vector<128x128xf32>
    %86 = arith.addf %77, %85 : vector<128x128xf32>
    %c0_62 = arith.constant 0 : index
    %c0_63 = arith.constant 0 : index
    %87 = vector.load %arg4[%c0_62, %c0_63] : memref<1x128xf32, #tpu.memory_space<vmem>>, vector<1x128xf32>
    %88 = vector.broadcast %87 : vector<1x128xf32> to vector<128x128xf32>
    %89 = arith.addf %86, %88 : vector<128x128xf32>
    %cst_64 = arith.constant 0.000000e+00 : f32
    %90 = vector.broadcast %cst_64 : f32 to vector<128x128xf32>
    %91 = arith.maximumf %89, %90 : vector<128x128xf32>
    %c0_65 = arith.constant 0 : index
    %c0_66 = arith.constant 0 : index
    %c0_67 = arith.constant 0 : index
    %92 = vector.load %arg8[%c0_65, %c0_66, %c0_67] : memref<1x1x128xf32, #tpu.memory_space<vmem>>, vector<1x1x128xf32>
    %cst_68 = arith.constant dense<0.000000e+00> : vector<128xf32>
    %93 = vector.multi_reduction <add>, %91, %cst_68 [0] : vector<128x128xf32> to vector<128xf32>
    %94 = vector.shape_cast %93 : vector<128xf32> to vector<1x128xf32>
    %95 = vector.shape_cast %94 : vector<1x128xf32> to vector<1x1x128xf32>
    %96 = arith.addf %92, %95 : vector<1x1x128xf32>
    %c0_69 = arith.constant 0 : index
    %c0_70 = arith.constant 0 : index
    %c0_71 = arith.constant 0 : index
    %97 = vector.load %arg8[%c0_69, %c0_70, %c0_71] : memref<1x1x128xf32, #tpu.memory_space<vmem>>, vector<1x1x128xf32>
    tpu.vector_store %arg8[%c0_69, %c0_70, %c0_71], %96 {strides = array<i32>} : memref<1x1x128xf32, #tpu.memory_space<vmem>>, vector<1x1x128xf32>,
    %c1_i32_72 = arith.constant 1 : i32
    %98 = arith.cmpi eq, %arg1, %c1_i32_72 : i32
    %99 = arith.extui %98 : i1 to i32
    %c0_i32_73 = arith.constant 0 : i32
    %100 = arith.cmpi ne, %99, %c0_i32_73 : i32
    scf.if %100 {
      %c0_74 = arith.constant 0 : index
      %c0_75 = arith.constant 0 : index
      %c0_76 = arith.constant 0 : index
      %101 = vector.load %arg8[%c0_74, %c0_75, %c0_76] : memref<1x1x128xf32, #tpu.memory_space<vmem>>, vector<1x1x128xf32>
      %102 = vector.shape_cast %101 : vector<1x1x128xf32> to vector<1x128xf32>
      %cst_77 = arith.constant 3.906250e-03 : f32
      %103 = vector.broadcast %cst_77 : f32 to vector<1x128xf32>
      %104 = arith.mulf %102, %103 : vector<1x128xf32>
      %105 = vector.shape_cast %104 : vector<1x128xf32> to vector<1x1x128xf32>
      %c0_78 = arith.constant 0 : index
      %c0_79 = arith.constant 0 : index
      %c0_80 = arith.constant 0 : index
      %106 = vector.load %arg8[%c0_78, %c0_79, %c0_80] : memref<1x1x128xf32, #tpu.memory_space<vmem>>, vector<1x1x128xf32>
      tpu.vector_store %arg8[%c0_78, %c0_79, %c0_80], %105 {strides = array<i32>} : memref<1x1x128xf32, #tpu.memory_space<vmem>>, vector<1x1x128xf32>,
      %c0_81 = arith.constant 0 : index
      %c0_82 = arith.constant 0 : index
      %107 = vector.load %arg5[%c0_81, %c0_82] : memref<128x128xf32, #tpu.memory_space<vmem>>, vector<128x128xf32>
      %cst_83 = arith.constant dense<0.000000e+00> : vector<1x128xf32>
      %108 = tpu.matmul %104, %107, %cst_83 {dimension_numbers = #tpu.dot_dimension_numbers<[1], [0], [0], [1], [0, 0, 1, 1], [], []>} : vector<1x128xf32>, vector<128x128xf32>, vector<1x128xf32> -> vector<1x128xf32>
      %c0_84 = arith.constant 0 : index
      %c0_85 = arith.constant 0 : index
      %109 = vector.load %arg6[%c0_84, %c0_85] : memref<1x128xf32, #tpu.memory_space<vmem>>, vector<1x128xf32>
      %110 = arith.addf %108, %109 : vector<1x128xf32>
      %111 = vector.shape_cast %110 : vector<1x128xf32> to vector<1x1x128xf32>
      %c0_86 = arith.constant 0 : index
      %c0_87 = arith.constant 0 : index
      %c0_88 = arith.constant 0 : index
      %112 = vector.load %arg7[%c0_86, %c0_87, %c0_88] : memref<1x1x128xf32, #tpu.memory_space<vmem>>, vector<1x1x128xf32>
      tpu.vector_store %arg7[%c0_86, %c0_87, %c0_88], %111 {strides = array<i32>} : memref<1x1x128xf32, #tpu.memory_space<vmem>>, vector<1x1x128xf32>,
    } else {
    }
    return
  }
  func.func @transform_0(%arg0: i32, %arg1: i32) -> (i32, i32, i32, i32) {
    %c0_i32 = arith.constant 0 : i32
    %c0_i32_0 = arith.constant 0 : i32
    %c0_i32_1 = arith.constant 0 : i32
    %c0_i32_2 = arith.constant 0 : i32
    return %arg0, %c0_i32, %c0_i32_0, %c0_i32_1 : i32, i32, i32, i32
  }
  func.func @transform_1(%arg0: i32, %arg1: i32) -> (i32, i32, i32) {
    %c0_i32 = arith.constant 0 : i32
    %c0_i32_0 = arith.constant 0 : i32
    %c0_i32_1 = arith.constant 0 : i32
    %c0_i32_2 = arith.constant 0 : i32
    return %c0_i32, %c0_i32_0, %c0_i32_1 : i32, i32, i32
  }
  func.func @transform_2(%arg0: i32, %arg1: i32) -> (i32, i32) {
    %c0_i32 = arith.constant 0 : i32
    %c0_i32_0 = arith.constant 0 : i32
    %c0_i32_1 = arith.constant 0 : i32
    return %c0_i32, %c0_i32_0 : i32, i32
  }
  func.func @transform_3(%arg0: i32, %arg1: i32) -> (i32, i32) {
    %c0_i32 = arith.constant 0 : i32
    %c0_i32_0 = arith.constant 0 : i32
    %c0_i32_1 = arith.constant 0 : i32
    return %c0_i32, %c0_i32_0 : i32, i32
  }
  func.func @transform_4(%arg0: i32, %arg1: i32) -> (i32, i32) {
    %c0_i32 = arith.constant 0 : i32
    %c0_i32_0 = arith.constant 0 : i32
    %c0_i32_1 = arith.constant 0 : i32
    return %c0_i32, %c0_i32_0 : i32, i32
  }
  func.func @transform_5(%arg0: i32, %arg1: i32) -> (i32, i32, i32) {
    %c0_i32 = arith.constant 0 : i32
    %c0_i32_0 = arith.constant 0 : i32
    %c0_i32_1 = arith.constant 0 : i32
    return %arg0, %c0_i32, %c0_i32_0 : i32, i32, i32
  }
  func.func @transform_6(%arg0: i32, %arg1: i32) -> (i32, i32, i32) {
    %c0_i32 = arith.constant 0 : i32
    %c0_i32_0 = arith.constant 0 : i32
    %c0_i32_1 = arith.constant 0 : i32
    return %arg0, %c0_i32, %c0_i32_0 : i32, i32, i32
  }
}

</mosaic_0001>

<llo_original>
// kernel: fused_conv_pool_fc.1
$region0: #{fused_conv_pool_fc.1}
  #allocation0 [shape = 'u32[]', space=smem, size = 0x4, offset = 0x4, fixed_abs, tag = 'smem constant byte address 0x4 - core index']
  #allocation1 [shape = 'u32[144,128]{1,0:T(1,128)}', space=vmem, size = 0x12000, scoped, tag = 'internal scratch']
  %s0 = inlined_call_operand.vmem [shape: bf16[2,18,18,8], index: 0, kind: input, shape index: {}]
  %s1 = inlined_call_operand.vmem [shape: bf16[9,8,128], index: 1, kind: input, shape index: {}]
  %s2 = inlined_call_operand.vmem [shape: f32[1,128], index: 2, kind: input, shape index: {}]
  %s3 = inlined_call_operand.vmem [shape: f32[128,128], index: 3, kind: input, shape index: {}]
  %s4 = inlined_call_operand.vmem [shape: f32[1,128], index: 4, kind: input, shape index: {}]
  %s5 = inlined_call_operand.hbm [shape: f32[2,1,128], index: 5, kind: output, shape index: {0}]
  %s6 = inlined_call_operand.hbm [shape: f32[2,1,128], index: 6, kind: output, shape index: {1}]
  %7 = xla_tuple %s5, %s6
  %s8 = sld [smem:[#allocation0]]
  $region69: #{fused_conv_pool_fc.1} parent=0
    _
  %s10 = ssub.s32 1, %s8
  %s11 = scalar_select 0, %s10, %s8
  $region1: #{fused_conv_pool_fc.1} parent=0
    #allocation2 [shape = 'u8[1024]{0}', space=vmem, size = 0x400, scoped, tag = 'output window, operand 0']
    #allocation3 [shape = 's32[2]{0}', space=sflag, size = 0x8, scoped, tag = 'scoped memory for fused_conv_pool_fc.1']
    #allocation4 [shape = 'u8[1024]{0}', space=vmem, size = 0x400, scoped, tag = 'output window, operand 1']
    #allocation5 [shape = 's32[2]{0}', space=sflag, size = 0x8, scoped, tag = 'scoped memory for fused_conv_pool_fc.1']
    %12 = vsyncpa [#allocation3], 0
    %s13 = scalar_lea.sflag [#allocation3], 1
    %14 = vsyncpa %s13, 0
    %15 = vsyncpa [#allocation5], 0
    %s16 = scalar_lea.sflag [#allocation5], 1
    %17 = vsyncpa %s16, 0
    loop: start=0, step=1, limit=6
    $region2: #{fused_conv_pool_fc.1} parent=1 // loop_pre_header
      _
    $region3: #{fused_conv_pool_fc.1} parent=1 // loop_header
      %s19 = sphi 0, %s23
      %p20 = scmp.ge.s32.totalorder %s19, 6
      %s26 = sphi 0, %s38
      %s27 = sphi 0, %s34
      %s28 = sphi 0, %s26
      %s29 = sphi 0, %s27
      %s30 = sphi 0, %s28
      %s31 = sphi 0, %s29
      %s41 = sphi 0, %s43
      %s44 = sphi 0, %s41
      %s45 = sphi 0, %s44
      %s61 = sphi 0, %s45
      %s65 = sphi 0, %s65
      %s67 = sphi 0, %s65
      %s68 = sphi 0, %s67
      %s82 = sphi 0, %s68
      %s86 = sphi 0, %s86
      %s88 = sphi 0, %s86
      %s89 = sphi 0, %s88
      %s103 = sphi 0, %s89
      %s107 = sphi 0, %s107
      %s109 = sphi 0, %s107
      %s110 = sphi 0, %s109
      %s124 = sphi 0, %s110
      %s128 = sphi 0, %s128
      %s130 = sphi 0, %s128
      %s131 = sphi 0, %s130
      %s145 = sphi 0, %s131
      %s151 = sphi 0, %s153
      %s154 = sphi 0, %s151
      %s155 = sphi 0, %s154
      %s171 = sphi 0, %s155
      %s177 = sphi 0, %s179
      %s180 = sphi 0, %s177
      %s181 = sphi 0, %s180
      %s197 = sphi 0, %s181
    $region4: #{fused_conv_pool_fc.1} parent=1 // loop_header_branch
      %22 = sbr.rel (%p20) target = $region8
    $region5: #{fused_conv_pool_fc.1} parent=1 // loop_body
      %s24 = ssub.s32 %s19, 1
      %s25 = ssub.s32 %s19, 2
      %s32 = sadd.s32 1, %s27
      %p33 = scmp.ge.s32.totalorder %s32, 2
      %s34 = scalar_select %p33, 0, %s32
      %s35 = sadd.s32 1, %s26
      %s36 = scalar_select %p33, %s35, %s26
      %p37 = scmp.ge.s32.totalorder %s36, 2
      %s38 = scalar_select %p37, 0, %s36
      %s39 = ssub.s32 %s26, %s38
      %p40 = scmp.eq.s32.totalorder %s39, 0
      %s42 = sadd.s32 %s41, 1
      %s43 = scalar_select %p40, %s41, %s42
      %p46 = pneg %p40
      %p47 = scmp.eq.s32.totalorder %s19, 3
      %p48 = por %p46, %p47
      %p49 = scmp.ne.s32.totalorder %s41, %s44
      %p50 = scmp.eq.s32.totalorder %s19, 0
      %p51 = por %p49, %p50
      %p52 = scmp.ne.s32.totalorder %s41, %s44
      %p53 = scmp.eq.s32.totalorder %s24, 3
      %p54 = por %p52, %p53
      %p55 = scmp.ne.s32.totalorder %s44, %s45
      %p56 = scmp.eq.s32.totalorder %s24, 0
      %p57 = por %p55, %p56
      %p58 = scmp.ne.s32.totalorder %s44, %s45
      %p59 = scmp.eq.s32.totalorder %s25, 3
      %p60 = por %p58, %p59
      %p62 = scmp.ne.s32.totalorder %s45, %s61
      %p63 = scmp.eq.s32.totalorder %s25, 0
      %p64 = por %p62, %p63
      %s66 = sadd.s32 %s65, 1
      %p69 = scmp.eq.s32.totalorder %s19, 3
      %p70 = scmp.ne.s32.totalorder %s65, %s67
      %p71 = scmp.eq.s32.totalorder %s19, 0
      %p72 = por %p70, %p71
      %p73 = scmp.ne.s32.totalorder %s65, %s67
      %p74 = scmp.eq.s32.totalorder %s24, 3
      %p75 = por %p73, %p74
      %p76 = scmp.ne.s32.totalorder %s67, %s68
      %p77 = scmp.eq.s32.totalorder %s24, 0
      %p78 = por %p76, %p77
      %p79 = scmp.ne.s32.totalorder %s67, %s68
      %p80 = scmp.eq.s32.totalorder %s25, 3
      %p81 = por %p79, %p80
      %p83 = scmp.ne.s32.totalorder %s68, %s82
      %p84 = scmp.eq.s32.totalorder %s25, 0
      %p85 = por %p83, %p84
      %s87 = sadd.s32 %s86, 1
      %p90 = scmp.eq.s32.totalorder %s19, 3
      %p91 = scmp.ne.s32.totalorder %s86, %s88
      %p92 = scmp.eq.s32.totalorder %s19, 0
      %p93 = por %p91, %p92
      %p94 = scmp.ne.s32.totalorder %s86, %s88
      %p95 = scmp.eq.s32.totalorder %s24, 3
      %p96 = por %p94, %p95
      %p97 = scmp.ne.s32.totalorder %s88, %s89
      %p98 = scmp.eq.s32.totalorder %s24, 0
      %p99 = por %p97, %p98
      %p100 = scmp.ne.s32.totalorder %s88, %s89
      %p101 = scmp.eq.s32.totalorder %s25, 3
      %p102 = por %p100, %p101
      %p104 = scmp.ne.s32.totalorder %s89, %s103
      %p105 = scmp.eq.s32.totalorder %s25, 0
      %p106 = por %p104, %p105
      %s108 = sadd.s32 %s107, 1
      %p111 = scmp.eq.s32.totalorder %s19, 3
      %p112 = scmp.ne.s32.totalorder %s107, %s109
      %p113 = scmp.eq.s32.totalorder %s19, 0
      %p114 = por %p112, %p113
      %p115 = scmp.ne.s32.totalorder %s107, %s109
      %p116 = scmp.eq.s32.totalorder %s24, 3
      %p117 = por %p115, %p116
      %p118 = scmp.ne.s32.totalorder %s109, %s110
      %p119 = scmp.eq.s32.totalorder %s24, 0
      %p120 = por %p118, %p119
      %p121 = scmp.ne.s32.totalorder %s109, %s110
      %p122 = scmp.eq.s32.totalorder %s25, 3
      %p123 = por %p121, %p122
      %p125 = scmp.ne.s32.totalorder %s110, %s124
      %p126 = scmp.eq.s32.totalorder %s25, 0
      %p127 = por %p125, %p126
      %s129 = sadd.s32 %s128, 1
      %p132 = scmp.eq.s32.totalorder %s19, 3
      %p133 = scmp.ne.s32.totalorder %s128, %s130
      %p134 = scmp.eq.s32.totalorder %s19, 0
      %p135 = por %p133, %p134
      %p136 = scmp.ne.s32.totalorder %s128, %s130
      %p137 = scmp.eq.s32.totalorder %s24, 3
      %p138 = por %p136, %p137
      %p139 = scmp.ne.s32.totalorder %s130, %s131
      %p140 = scmp.eq.s32.totalorder %s24, 0
      %p141 = por %p139, %p140
      %p142 = scmp.ne.s32.totalorder %s130, %s131
      %p143 = scmp.eq.s32.totalorder %s25, 3
      %p144 = por %p142, %p143
      %p146 = scmp.ne.s32.totalorder %s131, %s145
      %p147 = scmp.eq.s32.totalorder %s25, 0
      %p148 = por %p146, %p147
      %s149 = ssub.s32 %s26, %s38
      %p150 = scmp.eq.s32.totalorder %s149, 0
      %s152 = sadd.s32 %s151, 1
      %s153 = scalar_select %p150, %s151, %s152
      %p156 = pneg %p150
      %p157 = scmp.eq.s32.totalorder %s19, 3
      %p158 = por %p156, %p157
      %p159 = scmp.ne.s32.totalorder %s151, %s154
      %p160 = scmp.eq.s32.totalorder %s19, 0
      %p161 = por %p159, %p160
      %p162 = scmp.ne.s32.totalorder %s151, %s154
      %p163 = scmp.eq.s32.totalorder %s24, 3
      %p164 = por %p162, %p163
      %p165 = scmp.ne.s32.totalorder %s154, %s155
      %p166 = scmp.eq.s32.totalorder %s24, 0
      %p167 = por %p165, %p166
      %p168 = scmp.ne.s32.totalorder %s154, %s155
      %p169 = scmp.eq.s32.totalorder %s25, 3
      %p170 = por %p168, %p169
      %p172 = scmp.ne.s32.totalorder %s155, %s171
      %p173 = scmp.eq.s32.totalorder %s25, 0
      %p174 = por %p172, %p173
      %s175 = ssub.s32 %s26, %s38
      %p176 = scmp.eq.s32.totalorder %s175, 0
      %s178 = sadd.s32 %s177, 1
      %s179 = scalar_select %p176, %s177, %s178
      %p182 = pneg %p176
      %p183 = scmp.eq.s32.totalorder %s19, 3
      %p184 = por %p182, %p183
      %p185 = scmp.ne.s32.totalorder %s177, %s180
      %p186 = scmp.eq.s32.totalorder %s19, 0
      %p187 = por %p185, %p186
      %p188 = scmp.ne.s32.totalorder %s177, %s180
      %p189 = scmp.eq.s32.totalorder %s24, 3
      %p190 = por %p188, %p189
      %p191 = scmp.ne.s32.totalorder %s180, %s181
      %p192 = scmp.eq.s32.totalorder %s24, 0
      %p193 = por %p191, %p192
      %p194 = scmp.ne.s32.totalorder %s180, %s181
      %p195 = scmp.eq.s32.totalorder %s25, 3
      %p196 = por %p194, %p195
      %p198 = scmp.ne.s32.totalorder %s181, %s197
      %p199 = scmp.eq.s32.totalorder %s25, 0
      %p200 = por %p198, %p199
      %p201 = scmp.le.s32.totalorder 1, %s19
      %p202 = scmp.lt.s32.totalorder %s19, 5
      %p203 = pnand %p201, %p202
      %p204 = pneg %p203
      // Predicated region
      $region9: #{fused_conv_pool_fc.1} parent=5 // pred_check
        _
      $region10: #{fused_conv_pool_fc.1} parent=5 // pred_check_branch
        %206 = sbr.rel (%p203) target = $region12
      $region11: #{fused_conv_pool_fc.1} parent=5 // pred_region
        %s207 = ssub.s32 %s19, 1
        // Predicated region
        $region13: #{fused_conv_pool_fc.1} parent=11 // pred_check
          %p208 = pneg %p78
        $region14: #{fused_conv_pool_fc.1} parent=11 // pred_check_branch
          %210 = sbr.rel (%p208) target = $region16
        $region15: #{fused_conv_pool_fc.1} parent=11 // pred_region
          _
        $region16: #{fused_conv_pool_fc.1} parent=11 // pred_fallthru
          _
        // Predicated region
        $region17: #{fused_conv_pool_fc.1} parent=11 // pred_check
          %p211 = pneg %p99
        $region18: #{fused_conv_pool_fc.1} parent=11 // pred_check_branch
          %213 = sbr.rel (%p211) target = $region20
        $region19: #{fused_conv_pool_fc.1} parent=11 // pred_region
          _
        $region20: #{fused_conv_pool_fc.1} parent=11 // pred_fallthru
          _
        // Predicated region
        $region21: #{fused_conv_pool_fc.1} parent=11 // pred_check
          %p214 = pneg %p120
        $region22: #{fused_conv_pool_fc.1} parent=11 // pred_check_branch
          %216 = sbr.rel (%p214) target = $region24
        $region23: #{fused_conv_pool_fc.1} parent=11 // pred_region
          _
        $region24: #{fused_conv_pool_fc.1} parent=11 // pred_fallthru
          _
        // Predicated region
        $region25: #{fused_conv_pool_fc.1} parent=11 // pred_check
          %p217 = pneg %p141
        $region26: #{fused_conv_pool_fc.1} parent=11 // pred_check_branch
          %219 = sbr.rel (%p217) target = $region28
        $region27: #{fused_conv_pool_fc.1} parent=11 // pred_region
          _
        $region28: #{fused_conv_pool_fc.1} parent=11 // pred_fallthru
          _
      $region12: #{fused_conv_pool_fc.1} parent=5 // pred_fallthru
        _
      %p220 = scmp.lt.s32.totalorder %s19, 4
      // Predicated region
      $region29: #{fused_conv_pool_fc.1} parent=5 // pred_check
        %p221 = pneg %p220
      $region30: #{fused_conv_pool_fc.1} parent=5 // pred_check_branch
        %223 = sbr.rel (%p221) target = $region32
      $region31: #{fused_conv_pool_fc.1} parent=5 // pred_region
        // Predicated region
        $region33: #{fused_conv_pool_fc.1} parent=31 // pred_check
          %p224 = pneg %p51
        $region34: #{fused_conv_pool_fc.1} parent=31 // pred_check_branch
          %226 = sbr.rel (%p224) target = $region36
        $region35: #{fused_conv_pool_fc.1} parent=31 // pred_region
          %p227 = scmp.lt.s32.totalorder %s26, 1
          %s228 = scalar_select %p227, %s26, 1
          %s229 = smul.addr %s228, 54
          %s230 = smul.addr %s229, 4
          %s231 = scalar_lea.vmem %s0, %s230
        $region36: #{fused_conv_pool_fc.1} parent=31 // pred_fallthru
          _
      $region32: #{fused_conv_pool_fc.1} parent=5 // pred_fallthru
        _
      %p232 = scmp.le.s32.totalorder 1, %s19
      %p233 = scmp.lt.s32.totalorder %s19, 5
      %p234 = pnand %p232, %p233
      %p235 = pneg %p234
      // Predicated region
      $region37: #{fused_conv_pool_fc.1} parent=5 // pred_check
        _
      $region38: #{fused_conv_pool_fc.1} parent=5 // pred_check_branch
        %237 = sbr.rel (%p234) target = $region40
      $region39: #{fused_conv_pool_fc.1} parent=5 // pred_region
        %s238 = ssub.s32 %s19, 1
        %p239 = scmp.lt.s32.totalorder %s28, 1
        %s240 = scalar_select %p239, %s28, 1
        %s241 = smul.addr %s240, 54
        %s242 = smul.addr %s241, 4
        %s243 = scalar_lea.vmem %s0, %s242
        %p244 = pneg %p57
        %p245 = pneg %p54
        %p246 = pneg %p78
        %p247 = pneg %p75
        %p248 = pneg %p99
        %p249 = pneg %p96
        %p250 = pneg %p120
        %p251 = pneg %p117
        %p252 = pneg %p141
        %p253 = pneg %p138
        %p254 = pneg %p167
        %p255 = pneg %p164
        %s256 = sand.u32 %s154, 1
        %s257 = scalar_lea.sflag [#allocation3], %s256
        %s258 = sand.u32 %s154, 1
        %s259 = scalar_lea.vmem [#allocation2], %s258
        %p260 = pneg %p193
        %p261 = pneg %p190
        %s262 = sand.u32 %s180, 1
        %s263 = scalar_lea.sflag [#allocation5], %s262
        %s264 = sand.u32 %s180, 1
        %s265 = scalar_lea.vmem [#allocation4], %s264
        %p266 = scmp.lt.s32.totalorder %s28, 1
        %s267 = scalar_select %p266, %s28, 1
        %s268 = smul.addr %s267, 54
        %s269 = smul.addr %s268, 4
        %s270 = scalar_lea.vmem %s0, %s269
        %p272 = scmp.eq.s32.totalorder %s29, 0
        // Predicated region
        $region41: #{fused_conv_pool_fc.1} parent=39 // pred_check
          %p273 = pneg %p272
        $region42: #{fused_conv_pool_fc.1} parent=39 // pred_check_branch
          %275 = sbr.rel (%p273) target = $region44
        $region43: #{fused_conv_pool_fc.1} parent=39 // pred_region
          %276 = vst [vmem:[%s265] sm:$0x1] 0.0
        $region44: #{fused_conv_pool_fc.1} parent=39 // pred_fallthru
          _
        %s277 = smul.u32 %s29, 8
        %s278 = smul.u32 %s277, 3
        %s279 = smul.addr %s278, 4
        %s280 = scalar_lea.vmem %s270, %s279
        %v281 = vld [vmem:[%s280] sm:$0xf]
        %v282 = vld [vmem:[%s280 + $0x4] sm:$0xf]
        %v283 = vld [vmem:[%s280 + $0xc] sm:$0xf]
        %v284 = vld [vmem:[%s280 + $0x10] sm:$0xf]
        %v285 = vld [vmem:[%s280 + $0x18] sm:$0xf]
        %v286 = vld [vmem:[%s280 + $0x1c] sm:$0xf]
        %v287 = vld [vmem:[%s280 + $0x24] sm:$0xf]
        %v288 = vld [vmem:[%s280 + $0x28] sm:$0xf]
        %v289 = vld [vmem:[%s280 + $0x30] sm:$0xf]
        %v290 = vld [vmem:[%s280 + $0x34] sm:$0xf]
        %v291 = vld [vmem:[%s280 + $0x3c] sm:$0xf]
        %v292 = vld [vmem:[%s280 + $0x40] sm:$0xf]
        %v293 = vld [vmem:[%s280 + $0x48] sm:$0xf]
        %v294 = vld [vmem:[%s280 + $0x4c] sm:$0xf]
        %v295 = vld [vmem:[%s280 + $0x54] sm:$0xf]
        %v296 = vld [vmem:[%s280 + $0x58] sm:$0xf]
        %v297 = vld [vmem:[%s1] sm:$0xf]
        %v298 = vld [vmem:[%s280 + $0x8] sm:$0x1]
        %v299 = vld [vmem:[%s280 + $0x14] sm:$0x1]
        %v300 = vld [vmem:[%s280 + $0x20] sm:$0x1]
        %v301 = vld [vmem:[%s280 + $0x2c] sm:$0x1]
        %v302 = vld [vmem:[%s280 + $0x38] sm:$0x1]
        %v303 = vld [vmem:[%s280 + $0x44] sm:$0x1]
        %v304 = vld [vmem:[%s280 + $0x50] sm:$0x1]
        %v305 = vld [vmem:[%s280 + $0x5c] sm:$0x1]
        %vm306 = vsmask.f32 3328
        %vm307 = vsmask.f32 7440
        %vm308 = vmor %vm306, %vm307
        %v310 = vshrl.u32 %v281, 16
        %v312 = vrot.slane %v310, 4
        %v313 = vshll.u32 %v281, 16
        %v315 = vrot.slane %v313, 5
        %v316 = vor.u32 %v312, %v315
        %v317 = vrot.slane %v316, 4
        %v319 = vshll.u32 %v282, 16
        %v321 = vrot.slane %v319, 5
        %v322 = vsel %vm308, %v317, %v321
        %v323 = vshrl.u32 %v282, 16
        %v325 = vrot.slane %v323, 4
        %v326 = vor.u32 %v325, %v321
        %v327 = vrot.slane %v326, 4
        %v329 = vshll.u32 %v298, 16
        %v331 = vrot.slane %v329, 5
        %v332 = vsel %vm308, %v327, %v331
        %v334 = vshrl.u32 %v283, 16
        %v336 = vrot.slane %v334, 4
        %v337 = vshll.u32 %v283, 16
        %v339 = vrot.slane %v337, 5
        %v340 = vor.u32 %v336, %v339
        %v341 = vrot.slane %v340, 4
        %v343 = vshll.u32 %v284, 16
        %v345 = vrot.slane %v343, 5
        %v346 = vsel %vm308, %v341, %v345
        %v347 = vshrl.u32 %v284, 16
        %v349 = vrot.slane %v347, 4
        %v350 = vor.u32 %v349, %v345
        %v351 = vrot.slane %v350, 4
        %v353 = vshll.u32 %v299, 16
        %v355 = vrot.slane %v353, 5
        %v356 = vsel %vm308, %v351, %v355
        %v358 = vshrl.u32 %v285, 16
        %v360 = vrot.slane %v358, 4
        %v361 = vshll.u32 %v285, 16
        %v363 = vrot.slane %v361, 5
        %v364 = vor.u32 %v360, %v363
        %v365 = vrot.slane %v364, 4
        %v367 = vshll.u32 %v286, 16
        %v369 = vrot.slane %v367, 5
        %v370 = vsel %vm308, %v365, %v369
        %v371 = vshrl.u32 %v286, 16
        %v373 = vrot.slane %v371, 4
        %v374 = vor.u32 %v373, %v369
        %v375 = vrot.slane %v374, 4
        %v377 = vshll.u32 %v300, 16
        %v379 = vrot.slane %v377, 5
        %v380 = vsel %vm308, %v375, %v379
        %v382 = vshrl.u32 %v287, 16
        %v384 = vrot.slane %v382, 4
        %v385 = vshll.u32 %v287, 16
        %v387 = vrot.slane %v385, 5
        %v388 = vor.u32 %v384, %v387
        %v389 = vrot.slane %v388, 4
        %v391 = vshll.u32 %v288, 16
        %v393 = vrot.slane %v391, 5
        %v394 = vsel %vm308, %v389, %v393
        %v395 = vshrl.u32 %v288, 16
        %v397 = vrot.slane %v395, 4
        %v398 = vor.u32 %v397, %v393
        %v399 = vrot.slane %v398, 4
        %v401 = vshll.u32 %v301, 16
        %v403 = vrot.slane %v401, 5
        %v404 = vsel %vm308, %v399, %v403
        %v406 = vshrl.u32 %v289, 16
        %v408 = vrot.slane %v406, 4
        %v409 = vshll.u32 %v289, 16
        %v411 = vrot.slane %v409, 5
        %v412 = vor.u32 %v408, %v411
        %v413 = vrot.slane %v412, 4
        %v415 = vshll.u32 %v290, 16
        %v417 = vrot.slane %v415, 5
        %v418 = vsel %vm308, %v413, %v417
        %v419 = vshrl.u32 %v290, 16
        %v421 = vrot.slane %v419, 4
        %v422 = vor.u32 %v421, %v417
        %v423 = vrot.slane %v422, 4
        %v425 = vshll.u32 %v302, 16
        %v427 = vrot.slane %v425, 5
        %v428 = vsel %vm308, %v423, %v427
        %v430 = vshrl.u32 %v291, 16
        %v432 = vrot.slane %v430, 4
        %v433 = vshll.u32 %v291, 16
        %v435 = vrot.slane %v433, 5
        %v436 = vor.u32 %v432, %v435
        %v437 = vrot.slane %v436, 4
        %v439 = vshll.u32 %v292, 16
        %v441 = vrot.slane %v439, 5
        %v442 = vsel %vm308, %v437, %v441
        %v443 = vshrl.u32 %v292, 16
        %v445 = vrot.slane %v443, 4
        %v446 = vor.u32 %v445, %v441
        %v447 = vrot.slane %v446, 4
        %v449 = vshll.u32 %v303, 16
        %v451 = vrot.slane %v449, 5
        %v452 = vsel %vm308, %v447, %v451
        %v454 = vshrl.u32 %v293, 16
        %v456 = vrot.slane %v454, 4
        %v457 = vshll.u32 %v293, 16
        %v459 = vrot.slane %v457, 5
        %v460 = vor.u32 %v456, %v459
        %v461 = vrot.slane %v460, 4
        %v463 = vshll.u32 %v294, 16
        %v465 = vrot.slane %v463, 5
        %v466 = vsel %vm308, %v461, %v465
        %v467 = vshrl.u32 %v294, 16
        %v469 = vrot.slane %v467, 4
        %v470 = vor.u32 %v469, %v465
        %v471 = vrot.slane %v470, 4
        %v473 = vshll.u32 %v304, 16
        %v475 = vrot.slane %v473, 5
        %v476 = vsel %vm308, %v471, %v475
        %v478 = vshrl.u32 %v295, 16
        %v480 = vrot.slane %v478, 4
        %v481 = vshll.u32 %v295, 16
        %v483 = vrot.slane %v481, 5
        %v484 = vor.u32 %v480, %v483
        %v485 = vrot.slane %v484, 4
        %v487 = vshll.u32 %v296, 16
        %v489 = vrot.slane %v487, 5
        %v490 = vsel %vm308, %v485, %v489
        %v491 = vshrl.u32 %v296, 16
        %v493 = vrot.slane %v491, 4
        %v494 = vor.u32 %v493, %v489
        %v495 = vrot.slane %v494, 4
        %v497 = vshll.u32 %v305, 16
        %v499 = vrot.slane %v497, 5
        %v500 = vsel %vm308, %v495, %v499
        %s501 = scalar_lea.vmem %s1, 4
        %v502 = vld [vmem:[%s501] sm:$0xf]
        %v503 = vunpack.c.l.b16 %v322
        %v504 = vunpack.c.l.b16 %v332
        %v505 = vunpack.c.l.b16 %v346
        %v506 = vunpack.c.l.b16 %v356
        %v507 = vunpack.c.l.b16 %v370
        %v508 = vunpack.c.l.b16 %v380
        %v509 = vunpack.c.l.b16 %v394
        %v510 = vunpack.c.l.b16 %v404
        %v511 = vunpack.c.l.b16 %v418
        %v512 = vunpack.c.l.b16 %v428
        %v513 = vunpack.c.l.b16 %v442
        %v514 = vunpack.c.l.b16 %v452
        %v515 = vunpack.c.l.b16 %v466
        %v516 = vunpack.c.l.b16 %v476
        %v517 = vunpack.c.l.b16 %v490
        %v518 = vunpack.c.l.b16 %v500
        %v519 = vpack.c.b16 %v504, %v503
        %v520 = vpack.c.b16 %v506, %v505
        %v521 = vpack.c.b16 %v508, %v507
        %v522 = vpack.c.b16 %v510, %v509
        %v523 = vpack.c.b16 %v512, %v511
        %v524 = vpack.c.b16 %v514, %v513
        %v525 = vpack.c.b16 %v516, %v515
        %v526 = vpack.c.b16 %v518, %v517
        %vm527 = vcmask 64512
        %v529 = vsel %vm527, %v519, 0
        %v532 = vsel %vm527, %v520, 0
        %v535 = vsel %vm527, %v521, 0
        %v538 = vsel %vm527, %v522, 0
        %v541 = vsel %vm527, %v523, 0
        %v544 = vsel %vm527, %v524, 0
        %v547 = vsel %vm527, %v525, 0
        %v550 = vsel %vm527, %v526, 0
        %vm552 = vcmask 1043456
        %v554 = vsel %vm552, %v502, 0
        %556 = vmatprep.subr.bf16.mxu0 0
        %557 = vmatpush1.bf16.msra.mxu0 0
        %558 = vmatprep.subr.bf16.mxu0 0
        %559 = vmatpush1.bf16.msra.mxu0 0
        %560 = vmatprep.subr.bf16.mxu0 0
        %561 = vmatpush1.bf16.msra.mxu0 0
        %562 = vmatprep.subr.bf16.mxu0 0
        %563 = vmatpush1.bf16.msra.mxu0 0
        %564 = vmatprep.subr.bf16.mxu0 0
        %565 = vmatpush1.bf16.msra.mxu0 0
        %566 = vmatprep.subr.bf16.mxu0 0
        %567 = vmatpush1.bf16.msra.mxu0 0
        %568 = vmatprep.subr.bf16.mxu0 0
        %569 = vmatpush1.bf16.msra.mxu0 0
        %570 = vmatprep.subr.bf16.mxu0 0
        %571 = vmatpush1.bf16.msra.mxu0 %v554
        %572 = vmatprep.subr.bf16.mxu0 0
        %573 = vmatpush2.bf16.msra.mxu0 0
        %574 = vmatprep.subr.bf16.mxu0 0
        %575 = vmatpush2.bf16.msra.mxu0 0
        %576 = vmatprep.subr.bf16.mxu0 0
        %577 = vmatpush2.bf16.msra.mxu0 0
        %578 = vmatprep.subr.bf16.mxu0 0
        %579 = vmatpush2.bf16.msra.mxu0 0
        %580 = vmatprep.subr.bf16.mxu0 0
        %581 = vmatpush2.bf16.msra.mxu0 0
        %582 = vmatprep.subr.bf16.mxu0 0
        %583 = vmatpush2.bf16.msra.mxu0 0
        %584 = vmatprep.subr.bf16.mxu0 0
        %585 = vmatpush2.bf16.msra.mxu0 0
        %586 = vmatprep.subr.bf16.mxu0 0
        %587 = vmatpush2.bf16.msra.mxu0 0
        %588 = vmatprep.mubr.bf16.mxu0 0
        %589 = vmatmul.mubr.bf16.gmra.mxu0 %v529
        %v590 = vpop.f32.mrf.mxu0
        %v591 = vadd.f32 0.0, %v590
        %v592 = vpop.f32.mrf.mxu0
        %v593 = vpop.f32.mrf.mxu0
        %v594 = vadd.f32 0.0, %v593
        %v595 = vpop.f32.mrf.mxu0
        %596 = vmatprep.mubr.bf16.mxu0 0
        %597 = vmatmul.mubr.bf16.gmra.mxu0 %v532
        %v598 = vpop.f32.mrf.mxu0
        %v599 = vadd.f32 0.0, %v598
        %v600 = vpop.f32.mrf.mxu0
        %v601 = vpop.f32.mrf.mxu0
        %v602 = vadd.f32 0.0, %v601
        %v603 = vpop.f32.mrf.mxu0
        %604 = vmatprep.mubr.bf16.mxu0 0
        %605 = vmatmul.mubr.bf16.gmra.mxu0 %v535
        %v606 = vpop.f32.mrf.mxu0
        %v607 = vadd.f32 0.0, %v606
        %v608 = vpop.f32.mrf.mxu0
        %v609 = vpop.f32.mrf.mxu0
        %v610 = vadd.f32 0.0, %v609
        %v611 = vpop.f32.mrf.mxu0
        %612 = vmatprep.mubr.bf16.mxu0 0
        %613 = vmatmul.mubr.bf16.gmra.mxu0 %v538
        %v614 = vpop.f32.mrf.mxu0
        %v615 = vadd.f32 0.0, %v614
        %v616 = vpop.f32.mrf.mxu0
        %v617 = vpop.f32.mrf.mxu0
        %v618 = vadd.f32 0.0, %v617
        %v619 = vpop.f32.mrf.mxu0
        %620 = vmatprep.mubr.bf16.mxu0 0
        %621 = vmatmul.mubr.bf16.gmra.mxu0 %v541
        %v622 = vpop.f32.mrf.mxu0
        %v623 = vadd.f32 0.0, %v622
        %v624 = vpop.f32.mrf.mxu0
        %v625 = vpop.f32.mrf.mxu0
        %v626 = vadd.f32 0.0, %v625
        %v627 = vpop.f32.mrf.mxu0
        %628 = vmatprep.mubr.bf16.mxu0 0
        %629 = vmatmul.mubr.bf16.gmra.mxu0 %v544
        %v630 = vpop.f32.mrf.mxu0
        %v631 = vadd.f32 0.0, %v630
        %v632 = vpop.f32.mrf.mxu0
        %v633 = vpop.f32.mrf.mxu0
        %v634 = vadd.f32 0.0, %v633
        %v635 = vpop.f32.mrf.mxu0
        %636 = vmatprep.mubr.bf16.mxu0 0
        %637 = vmatmul.mubr.bf16.gmra.mxu0 %v547
        %v638 = vpop.f32.mrf.mxu0
        %v639 = vadd.f32 0.0, %v638
        %v640 = vpop.f32.mrf.mxu0
        %v641 = vpop.f32.mrf.mxu0
        %v642 = vadd.f32 0.0, %v641
        %v643 = vpop.f32.mrf.mxu0
        %644 = vmatprep.mubr.bf16.mxu0 0
        %645 = vmatmul.mubr.bf16.gmra.mxu0 %v550
        %v646 = vpop.f32.mrf.mxu0
        %v647 = vadd.f32 0.0, %v646
        %v648 = vpop.f32.mrf.mxu0
        %v649 = vpop.f32.mrf.mxu0
        %v650 = vadd.f32 0.0, %v649
        %v651 = vpop.f32.mrf.mxu0
        %652 = vdwg.mxu0
        %v669 = vunpack.c.l.b16 %v281
        %v670 = vunpack.c.l.b16 %v282
        %v671 = vunpack.c.l.b16 %v283
        %v672 = vunpack.c.l.b16 %v284
        %v673 = vunpack.c.l.b16 %v285
        %v674 = vunpack.c.l.b16 %v286
        %v675 = vunpack.c.l.b16 %v287
        %v676 = vunpack.c.l.b16 %v288
        %v677 = vunpack.c.l.b16 %v289
        %v678 = vunpack.c.l.b16 %v290
        %v679 = vunpack.c.l.b16 %v291
        %v680 = vunpack.c.l.b16 %v292
        %v681 = vunpack.c.l.b16 %v293
        %v682 = vunpack.c.l.b16 %v294
        %v683 = vunpack.c.l.b16 %v295
        %v684 = vunpack.c.l.b16 %v296
        %v685 = vpack.c.b16 %v670, %v669
        %v686 = vpack.c.b16 %v672, %v671
        %v687 = vpack.c.b16 %v674, %v673
        %v688 = vpack.c.b16 %v676, %v675
        %v689 = vpack.c.b16 %v678, %v677
        %v690 = vpack.c.b16 %v680, %v679
        %v691 = vpack.c.b16 %v682, %v681
        %v692 = vpack.c.b16 %v684, %v683
        %v694 = vsel %vm527, %v685, 0
        %v697 = vsel %vm527, %v686, 0
        %v700 = vsel %vm527, %v687, 0
        %v703 = vsel %vm527, %v688, 0
        %v706 = vsel %vm527, %v689, 0
        %v709 = vsel %vm527, %v690, 0
        %v712 = vsel %vm527, %v691, 0
        %v715 = vsel %vm527, %v692, 0
        %v718 = vsel %vm552, %v297, 0
        %720 = vmatprep.subr.bf16.mxu0 0
        %721 = vmatpush1.bf16.msra.mxu0 0
        %722 = vmatprep.subr.bf16.mxu0 0
        %723 = vmatpush1.bf16.msra.mxu0 0
        %724 = vmatprep.subr.bf16.mxu0 0
        %725 = vmatpush1.bf16.msra.mxu0 0
        %726 = vmatprep.subr.bf16.mxu0 0
        %727 = vmatpush1.bf16.msra.mxu0 0
        %728 = vmatprep.subr.bf16.mxu0 0
        %729 = vmatpush1.bf16.msra.mxu0 0
        %730 = vmatprep.subr.bf16.mxu0 0
        %731 = vmatpush1.bf16.msra.mxu0 0
        %732 = vmatprep.subr.bf16.mxu0 0
        %733 = vmatpush1.bf16.msra.mxu0 0
        %734 = vmatprep.subr.bf16.mxu0 0
        %735 = vmatpush1.bf16.msra.mxu0 %v718
        %736 = vmatprep.subr.bf16.mxu0 0
        %737 = vmatpush2.bf16.msra.mxu0 0
        %738 = vmatprep.subr.bf16.mxu0 0
        %739 = vmatpush2.bf16.msra.mxu0 0
        %740 = vmatprep.subr.bf16.mxu0 0
        %741 = vmatpush2.bf16.msra.mxu0 0
        %742 = vmatprep.subr.bf16.mxu0 0
        %743 = vmatpush2.bf16.msra.mxu0 0
        %744 = vmatprep.subr.bf16.mxu0 0
        %745 = vmatpush2.bf16.msra.mxu0 0
        %746 = vmatprep.subr.bf16.mxu0 0
        %747 = vmatpush2.bf16.msra.mxu0 0
        %748 = vmatprep.subr.bf16.mxu0 0
        %749 = vmatpush2.bf16.msra.mxu0 0
        %750 = vmatprep.subr.bf16.mxu0 0
        %751 = vmatpush2.bf16.msra.mxu0 0
        %752 = vmatprep.mubr.bf16.mxu0 0
        %753 = vmatmul.mubr.bf16.gmra.mxu0 %v694
        %v754 = vpop.f32.mrf.mxu0
        %v755 = vadd.f32 %v591, %v754
        %v756 = vpop.f32.mrf.mxu0
        %v757 = vpop.f32.mrf.mxu0
        %v758 = vadd.f32 %v594, %v757
        %v759 = vpop.f32.mrf.mxu0
        %760 = vmatprep.mubr.bf16.mxu0 0
        %761 = vmatmul.mubr.bf16.gmra.mxu0 %v697
        %v762 = vpop.f32.mrf.mxu0
        %v763 = vadd.f32 %v599, %v762
        %v764 = vpop.f32.mrf.mxu0
        %v765 = vpop.f32.mrf.mxu0
        %v766 = vadd.f32 %v602, %v765
        %v767 = vpop.f32.mrf.mxu0
        %768 = vmatprep.mubr.bf16.mxu0 0
        %769 = vmatmul.mubr.bf16.gmra.mxu0 %v700
        %v770 = vpop.f32.mrf.mxu0
        %v771 = vadd.f32 %v607, %v770
        %v772 = vpop.f32.mrf.mxu0
        %v773 = vpop.f32.mrf.mxu0
        %v774 = vadd.f32 %v610, %v773
        %v775 = vpop.f32.mrf.mxu0
        %776 = vmatprep.mubr.bf16.mxu0 0
        %777 = vmatmul.mubr.bf16.gmra.mxu0 %v703
        %v778 = vpop.f32.mrf.mxu0
        %v779 = vadd.f32 %v615, %v778
        %v780 = vpop.f32.mrf.mxu0
        %v781 = vpop.f32.mrf.mxu0
        %v782 = vadd.f32 %v618, %v781
        %v783 = vpop.f32.mrf.mxu0
        %784 = vmatprep.mubr.bf16.mxu0 0
        %785 = vmatmul.mubr.bf16.gmra.mxu0 %v706
        %v786 = vpop.f32.mrf.mxu0
        %v787 = vadd.f32 %v623, %v786
        %v788 = vpop.f32.mrf.mxu0
        %v789 = vpop.f32.mrf.mxu0
        %v790 = vadd.f32 %v626, %v789
        %v791 = vpop.f32.mrf.mxu0
        %792 = vmatprep.mubr.bf16.mxu0 0
        %793 = vmatmul.mubr.bf16.gmra.mxu0 %v709
        %v794 = vpop.f32.mrf.mxu0
        %v795 = vadd.f32 %v631, %v794
        %v796 = vpop.f32.mrf.mxu0
        %v797 = vpop.f32.mrf.mxu0
        %v798 = vadd.f32 %v634, %v797
        %v799 = vpop.f32.mrf.mxu0
        %800 = vmatprep.mubr.bf16.mxu0 0
        %801 = vmatmul.mubr.bf16.gmra.mxu0 %v712
        %v802 = vpop.f32.mrf.mxu0
        %v803 = vadd.f32 %v639, %v802
        %v804 = vpop.f32.mrf.mxu0
        %v805 = vpop.f32.mrf.mxu0
        %v806 = vadd.f32 %v642, %v805
        %v807 = vpop.f32.mrf.mxu0
        %808 = vmatprep.mubr.bf16.mxu0 0
        %809 = vmatmul.mubr.bf16.gmra.mxu0 %v715
        %v810 = vpop.f32.mrf.mxu0
        %v811 = vadd.f32 %v647, %v810
        %v812 = vpop.f32.mrf.mxu0
        %v813 = vpop.f32.mrf.mxu0
        %v814 = vadd.f32 %v650, %v813
        %v815 = vpop.f32.mrf.mxu0
        %816 = vdwg.mxu0
        %v817 = vld [vmem:[%s280] sm:$0xe]
        %v818 = vld [vmem:[%s280 + $0xc] sm:$0xe]
        %v819 = vld [vmem:[%s280 + $0x18] sm:$0xe]
        %v820 = vld [vmem:[%s280 + $0x24] sm:$0xe]
        %v821 = vld [vmem:[%s280 + $0x30] sm:$0xe]
        %v822 = vld [vmem:[%s280 + $0x3c] sm:$0xe]
        %v823 = vld [vmem:[%s280 + $0x48] sm:$0xe]
        %v824 = vld [vmem:[%s280 + $0x54] sm:$0xe]
        %vm841 = vcmask 1042432
        %vm842 = vcmask 1046532
        %vm843 = vmor %vm841, %vm842
        %v844 = vrot.slane %v817, 5
        %v845 = vrot.slane %v844, 4
        %v846 = vrot.slane %v282, 5
        %v847 = vsel %vm843, %v845, %v846
        %v848 = vrot.slane %v846, 4
        %v849 = vrot.slane %v298, 5
        %v850 = vsel %vm843, %v848, %v849
        %v851 = vrot.slane %v818, 5
        %v852 = vrot.slane %v851, 4
        %v853 = vrot.slane %v284, 5
        %v854 = vsel %vm843, %v852, %v853
        %v855 = vrot.slane %v853, 4
        %v856 = vrot.slane %v299, 5
        %v857 = vsel %vm843, %v855, %v856
        %v858 = vrot.slane %v819, 5
        %v859 = vrot.slane %v858, 4
        %v860 = vrot.slane %v286, 5
        %v861 = vsel %vm843, %v859, %v860
        %v862 = vrot.slane %v860, 4
        %v863 = vrot.slane %v300, 5
        %v864 = vsel %vm843, %v862, %v863
        %v865 = vrot.slane %v820, 5
        %v866 = vrot.slane %v865, 4
        %v867 = vrot.slane %v288, 5
        %v868 = vsel %vm843, %v866, %v867
        %v869 = vrot.slane %v867, 4
        %v870 = vrot.slane %v301, 5
        %v871 = vsel %vm843, %v869, %v870
        %v872 = vrot.slane %v821, 5
        %v873 = vrot.slane %v872, 4
        %v874 = vrot.slane %v290, 5
        %v875 = vsel %vm843, %v873, %v874
        %v876 = vrot.slane %v874, 4
        %v877 = vrot.slane %v302, 5
        %v878 = vsel %vm843, %v876, %v877
        %v879 = vrot.slane %v822, 5
        %v880 = vrot.slane %v879, 4
        %v881 = vrot.slane %v292, 5
        %v882 = vsel %vm843, %v880, %v881
        %v883 = vrot.slane %v881, 4
        %v884 = vrot.slane %v303, 5
        %v885 = vsel %vm843, %v883, %v884
        %v886 = vrot.slane %v823, 5
        %v887 = vrot.slane %v886, 4
        %v888 = vrot.slane %v294, 5
        %v889 = vsel %vm843, %v887, %v888
        %v890 = vrot.slane %v888, 4
        %v891 = vrot.slane %v304, 5
        %v892 = vsel %vm843, %v890, %v891
        %v893 = vrot.slane %v824, 5
        %v894 = vrot.slane %v893, 4
        %v895 = vrot.slane %v296, 5
        %v896 = vsel %vm843, %v894, %v895
        %v897 = vrot.slane %v895, 4
        %v898 = vrot.slane %v305, 5
        %v899 = vsel %vm843, %v897, %v898
        %s900 = scalar_lea.vmem %s1, 8
        %v901 = vld [vmem:[%s900] sm:$0xf]
        %v902 = vunpack.c.l.b16 %v847
        %v903 = vunpack.c.l.b16 %v850
        %v904 = vunpack.c.l.b16 %v854
        %v905 = vunpack.c.l.b16 %v857
        %v906 = vunpack.c.l.b16 %v861
        %v907 = vunpack.c.l.b16 %v864
        %v908 = vunpack.c.l.b16 %v868
        %v909 = vunpack.c.l.b16 %v871
        %v910 = vunpack.c.l.b16 %v875
        %v911 = vunpack.c.l.b16 %v878
        %v912 = vunpack.c.l.b16 %v882
        %v913 = vunpack.c.l.b16 %v885
        %v914 = vunpack.c.l.b16 %v889
        %v915 = vunpack.c.l.b16 %v892
        %v916 = vunpack.c.l.b16 %v896
        %v917 = vunpack.c.l.b16 %v899
        %v918 = vpack.c.b16 %v903, %v902
        %v919 = vpack.c.b16 %v905, %v904
        %v920 = vpack.c.b16 %v907, %v906
        %v921 = vpack.c.b16 %v909, %v908
        %v922 = vpack.c.b16 %v911, %v910
        %v923 = vpack.c.b16 %v913, %v912
        %v924 = vpack.c.b16 %v915, %v914
        %v925 = vpack.c.b16 %v917, %v916
        %v927 = vsel %vm527, %v918, 0
        %v930 = vsel %vm527, %v919, 0
        %v933 = vsel %vm527, %v920, 0
        %v936 = vsel %vm527, %v921, 0
        %v939 = vsel %vm527, %v922, 0
        %v942 = vsel %vm527, %v923, 0
        %v945 = vsel %vm527, %v924, 0
        %v948 = vsel %vm527, %v925, 0
        %v951 = vsel %vm552, %v901, 0
        %953 = vmatprep.subr.bf16.mxu0 0
        %954 = vmatpush1.bf16.msra.mxu0 0
        %955 = vmatprep.subr.bf16.mxu0 0
        %956 = vmatpush1.bf16.msra.mxu0 0
        %957 = vmatprep.subr.bf16.mxu0 0
        %958 = vmatpush1.bf16.msra.mxu0 0
        %959 = vmatprep.subr.bf16.mxu0 0
        %960 = vmatpush1.bf16.msra.mxu0 0
        %961 = vmatprep.subr.bf16.mxu0 0
        %962 = vmatpush1.bf16.msra.mxu0 0
        %963 = vmatprep.subr.bf16.mxu0 0
        %964 = vmatpush1.bf16.msra.mxu0 0
        %965 = vmatprep.subr.bf16.mxu0 0
        %966 = vmatpush1.bf16.msra.mxu0 0
        %967 = vmatprep.subr.bf16.mxu0 0
        %968 = vmatpush1.bf16.msra.mxu0 %v951
        %969 = vmatprep.subr.bf16.mxu0 0
        %970 = vmatpush2.bf16.msra.mxu0 0
        %971 = vmatprep.subr.bf16.mxu0 0
        %972 = vmatpush2.bf16.msra.mxu0 0
        %973 = vmatprep.subr.bf16.mxu0 0
        %974 = vmatpush2.bf16.msra.mxu0 0
        %975 = vmatprep.subr.bf16.mxu0 0
        %976 = vmatpush2.bf16.msra.mxu0 0
        %977 = vmatprep.subr.bf16.mxu0 0
        %978 = vmatpush2.bf16.msra.mxu0 0
        %979 = vmatprep.subr.bf16.mxu0 0
        %980 = vmatpush2.bf16.msra.mxu0 0
        %981 = vmatprep.subr.bf16.mxu0 0
        %982 = vmatpush2.bf16.msra.mxu0 0
        %983 = vmatprep.subr.bf16.mxu0 0
        %984 = vmatpush2.bf16.msra.mxu0 0
        %985 = vmatprep.mubr.bf16.mxu0 0
        %986 = vmatmul.mubr.bf16.gmra.mxu0 %v927
        %v987 = vpop.f32.mrf.mxu0
        %v988 = vadd.f32 0.0, %v987
        %v989 = vpop.f32.mrf.mxu0
        %v990 = vpop.f32.mrf.mxu0
        %v991 = vadd.f32 0.0, %v990
        %v992 = vpop.f32.mrf.mxu0
        %993 = vmatprep.mubr.bf16.mxu0 0
        %994 = vmatmul.mubr.bf16.gmra.mxu0 %v930
        %v995 = vpop.f32.mrf.mxu0
        %v996 = vadd.f32 0.0, %v995
        %v997 = vpop.f32.mrf.mxu0
        %v998 = vpop.f32.mrf.mxu0
        %v999 = vadd.f32 0.0, %v998
        %v1000 = vpop.f32.mrf.mxu0
        %1001 = vmatprep.mubr.bf16.mxu0 0
        %1002 = vmatmul.mubr.bf16.gmra.mxu0 %v933
        %v1003 = vpop.f32.mrf.mxu0
        %v1004 = vadd.f32 0.0, %v1003
        %v1005 = vpop.f32.mrf.mxu0
        %v1006 = vpop.f32.mrf.mxu0
        %v1007 = vadd.f32 0.0, %v1006
        %v1008 = vpop.f32.mrf.mxu0
        %1009 = vmatprep.mubr.bf16.mxu0 0
        %1010 = vmatmul.mubr.bf16.gmra.mxu0 %v936
        %v1011 = vpop.f32.mrf.mxu0
        %v1012 = vadd.f32 0.0, %v1011
        %v1013 = vpop.f32.mrf.mxu0
        %v1014 = vpop.f32.mrf.mxu0
        %v1015 = vadd.f32 0.0, %v1014
        %v1016 = vpop.f32.mrf.mxu0
        %1017 = vmatprep.mubr.bf16.mxu0 0
        %1018 = vmatmul.mubr.bf16.gmra.mxu0 %v939
        %v1019 = vpop.f32.mrf.mxu0
        %v1020 = vadd.f32 0.0, %v1019
        %v1021 = vpop.f32.mrf.mxu0
        %v1022 = vpop.f32.mrf.mxu0
        %v1023 = vadd.f32 0.0, %v1022
        %v1024 = vpop.f32.mrf.mxu0
        %1025 = vmatprep.mubr.bf16.mxu0 0
        %1026 = vmatmul.mubr.bf16.gmra.mxu0 %v942
        %v1027 = vpop.f32.mrf.mxu0
        %v1028 = vadd.f32 0.0, %v1027
        %v1029 = vpop.f32.mrf.mxu0
        %v1030 = vpop.f32.mrf.mxu0
        %v1031 = vadd.f32 0.0, %v1030
        %v1032 = vpop.f32.mrf.mxu0
        %1033 = vmatprep.mubr.bf16.mxu0 0
        %1034 = vmatmul.mubr.bf16.gmra.mxu0 %v945
        %v1035 = vpop.f32.mrf.mxu0
        %v1036 = vadd.f32 0.0, %v1035
        %v1037 = vpop.f32.mrf.mxu0
        %v1038 = vpop.f32.mrf.mxu0
        %v1039 = vadd.f32 0.0, %v1038
        %v1040 = vpop.f32.mrf.mxu0
        %1041 = vmatprep.mubr.bf16.mxu0 0
        %1042 = vmatmul.mubr.bf16.gmra.mxu0 %v948
        %v1043 = vpop.f32.mrf.mxu0
        %v1044 = vadd.f32 0.0, %v1043
        %v1045 = vpop.f32.mrf.mxu0
        %v1046 = vpop.f32.mrf.mxu0
        %v1047 = vadd.f32 0.0, %v1046
        %v1048 = vpop.f32.mrf.mxu0
        %1049 = vdwg.mxu0
        %v1050 = vadd.f32 %v755, %v988
        %v1051 = vadd.f32 %v758, %v991
        %v1052 = vadd.f32 %v763, %v996
        %v1053 = vadd.f32 %v766, %v999
        %v1054 = vadd.f32 %v771, %v1004
        %v1055 = vadd.f32 %v774, %v1007
        %v1056 = vadd.f32 %v779, %v1012
        %v1057 = vadd.f32 %v782, %v1015
        %v1058 = vadd.f32 %v787, %v1020
        %v1059 = vadd.f32 %v790, %v1023
        %v1060 = vadd.f32 %v795, %v1028
        %v1061 = vadd.f32 %v798, %v1031
        %v1062 = vadd.f32 %v803, %v1036
        %v1063 = vadd.f32 %v806, %v1039
        %v1064 = vadd.f32 %v811, %v1044
        %v1065 = vadd.f32 %v814, %v1047
        %s1066 = sadd.s32 %s277, 1
        %s1067 = smul.u32 %s1066, 3
        %s1068 = smul.addr %s1067, 4
        %s1069 = scalar_lea.vmem %s270, %s1068
        %v1070 = vld [vmem:[%s1069] sm:$0xf]
        %v1071 = vld [vmem:[%s1069 + $0x4] sm:$0xf]
        %v1072 = vld [vmem:[%s1069 + $0xc] sm:$0xf]
        %v1073 = vld [vmem:[%s1069 + $0x10] sm:$0xf]
        %v1074 = vld [vmem:[%s1069 + $0x18] sm:$0xf]
        %v1075 = vld [vmem:[%s1069 + $0x1c] sm:$0xf]
        %v1076 = vld [vmem:[%s1069 + $0x24] sm:$0xf]
        %v1077 = vld [vmem:[%s1069 + $0x28] sm:$0xf]
        %v1078 = vld [vmem:[%s1069 + $0x30] sm:$0xf]
        %v1079 = vld [vmem:[%s1069 + $0x34] sm:$0xf]
        %v1080 = vld [vmem:[%s1069 + $0x3c] sm:$0xf]
        %v1081 = vld [vmem:[%s1069 + $0x40] sm:$0xf]
        %v1082 = vld [vmem:[%s1069 + $0x48] sm:$0xf]
        %v1083 = vld [vmem:[%s1069 + $0x4c] sm:$0xf]
        %v1084 = vld [vmem:[%s1069 + $0x54] sm:$0xf]
        %v1085 = vld [vmem:[%s1069 + $0x58] sm:$0xf]
        %s1086 = scalar_lea.vmem %s1, 12
        %v1087 = vld [vmem:[%s1086] sm:$0xf]
        %v1104 = vunpack.c.l.b16 %v1070
        %v1105 = vunpack.c.l.b16 %v1071
        %v1106 = vunpack.c.l.b16 %v1072
        %v1107 = vunpack.c.l.b16 %v1073
        %v1108 = vunpack.c.l.b16 %v1074
        %v1109 = vunpack.c.l.b16 %v1075
        %v1110 = vunpack.c.l.b16 %v1076
        %v1111 = vunpack.c.l.b16 %v1077
        %v1112 = vunpack.c.l.b16 %v1078
        %v1113 = vunpack.c.l.b16 %v1079
        %v1114 = vunpack.c.l.b16 %v1080
        %v1115 = vunpack.c.l.b16 %v1081
        %v1116 = vunpack.c.l.b16 %v1082
        %v1117 = vunpack.c.l.b16 %v1083
        %v1118 = vunpack.c.l.b16 %v1084
        %v1119 = vunpack.c.l.b16 %v1085
        %v1120 = vpack.c.b16 %v1105, %v1104
        %v1121 = vpack.c.b16 %v1107, %v1106
        %v1122 = vpack.c.b16 %v1109, %v1108
        %v1123 = vpack.c.b16 %v1111, %v1110
        %v1124 = vpack.c.b16 %v1113, %v1112
        %v1125 = vpack.c.b16 %v1115, %v1114
        %v1126 = vpack.c.b16 %v1117, %v1116
        %v1127 = vpack.c.b16 %v1119, %v1118
        %v1129 = vsel %vm527, %v1120, 0
        %v1132 = vsel %vm527, %v1121, 0
        %v1135 = vsel %vm527, %v1122, 0
        %v1138 = vsel %vm527, %v1123, 0
        %v1141 = vsel %vm527, %v1124, 0
        %v1144 = vsel %vm527, %v1125, 0
        %v1147 = vsel %vm527, %v1126, 0
        %v1150 = vsel %vm527, %v1127, 0
        %v1153 = vsel %vm552, %v1087, 0
        %1155 = vmatprep.subr.bf16.mxu0 0
        %1156 = vmatpush1.bf16.msra.mxu0 0
        %1157 = vmatprep.subr.bf16.mxu0 0
        %1158 = vmatpush1.bf16.msra.mxu0 0
        %1159 = vmatprep.subr.bf16.mxu0 0
        %1160 = vmatpush1.bf16.msra.mxu0 0
        %1161 = vmatprep.subr.bf16.mxu0 0
        %1162 = vmatpush1.bf16.msra.mxu0 0
        %1163 = vmatprep.subr.bf16.mxu0 0
        %1164 = vmatpush1.bf16.msra.mxu0 0
        %1165 = vmatprep.subr.bf16.mxu0 0
        %1166 = vmatpush1.bf16.msra.mxu0 0
        %1167 = vmatprep.subr.bf16.mxu0 0
        %1168 = vmatpush1.bf16.msra.mxu0 0
        %1169 = vmatprep.subr.bf16.mxu0 0
        %1170 = vmatpush1.bf16.msra.mxu0 %v1153
        %1171 = vmatprep.subr.bf16.mxu0 0
        %1172 = vmatpush2.bf16.msra.mxu0 0
        %1173 = vmatprep.subr.bf16.mxu0 0
        %1174 = vmatpush2.bf16.msra.mxu0 0
        %1175 = vmatprep.subr.bf16.mxu0 0
        %1176 = vmatpush2.bf16.msra.mxu0 0
        %1177 = vmatprep.subr.bf16.mxu0 0
        %1178 = vmatpush2.bf16.msra.mxu0 0
        %1179 = vmatprep.subr.bf16.mxu0 0
        %1180 = vmatpush2.bf16.msra.mxu0 0
        %1181 = vmatprep.subr.bf16.mxu0 0
        %1182 = vmatpush2.bf16.msra.mxu0 0
        %1183 = vmatprep.subr.bf16.mxu0 0
        %1184 = vmatpush2.bf16.msra.mxu0 0
        %1185 = vmatprep.subr.bf16.mxu0 0
        %1186 = vmatpush2.bf16.msra.mxu0 0
        %1187 = vmatprep.mubr.bf16.mxu0 0
        %1188 = vmatmul.mubr.bf16.gmra.mxu0 %v1129
        %v1189 = vpop.f32.mrf.mxu0
        %v1190 = vadd.f32 0.0, %v1189
        %v1191 = vpop.f32.mrf.mxu0
        %v1192 = vpop.f32.mrf.mxu0
        %v1193 = vadd.f32 0.0, %v1192
        %v1194 = vpop.f32.mrf.mxu0
        %1195 = vmatprep.mubr.bf16.mxu0 0
        %1196 = vmatmul.mubr.bf16.gmra.mxu0 %v1132
        %v1197 = vpop.f32.mrf.mxu0
        %v1198 = vadd.f32 0.0, %v1197
        %v1199 = vpop.f32.mrf.mxu0
        %v1200 = vpop.f32.mrf.mxu0
        %v1201 = vadd.f32 0.0, %v1200
        %v1202 = vpop.f32.mrf.mxu0
        %1203 = vmatprep.mubr.bf16.mxu0 0
        %1204 = vmatmul.mubr.bf16.gmra.mxu0 %v1135
        %v1205 = vpop.f32.mrf.mxu0
        %v1206 = vadd.f32 0.0, %v1205
        %v1207 = vpop.f32.mrf.mxu0
        %v1208 = vpop.f32.mrf.mxu0
        %v1209 = vadd.f32 0.0, %v1208
        %v1210 = vpop.f32.mrf.mxu0
        %1211 = vmatprep.mubr.bf16.mxu0 0
        %1212 = vmatmul.mubr.bf16.gmra.mxu0 %v1138
        %v1213 = vpop.f32.mrf.mxu0
        %v1214 = vadd.f32 0.0, %v1213
        %v1215 = vpop.f32.mrf.mxu0
        %v1216 = vpop.f32.mrf.mxu0
        %v1217 = vadd.f32 0.0, %v1216
        %v1218 = vpop.f32.mrf.mxu0
        %1219 = vmatprep.mubr.bf16.mxu0 0
        %1220 = vmatmul.mubr.bf16.gmra.mxu0 %v1141
        %v1221 = vpop.f32.mrf.mxu0
        %v1222 = vadd.f32 0.0, %v1221
        %v1223 = vpop.f32.mrf.mxu0
        %v1224 = vpop.f32.mrf.mxu0
        %v1225 = vadd.f32 0.0, %v1224
        %v1226 = vpop.f32.mrf.mxu0
        %1227 = vmatprep.mubr.bf16.mxu0 0
        %1228 = vmatmul.mubr.bf16.gmra.mxu0 %v1144
        %v1229 = vpop.f32.mrf.mxu0
        %v1230 = vadd.f32 0.0, %v1229
        %v1231 = vpop.f32.mrf.mxu0
        %v1232 = vpop.f32.mrf.mxu0
        %v1233 = vadd.f32 0.0, %v1232
        %v1234 = vpop.f32.mrf.mxu0
        %1235 = vmatprep.mubr.bf16.mxu0 0
        %1236 = vmatmul.mubr.bf16.gmra.mxu0 %v1147
        %v1237 = vpop.f32.mrf.mxu0
        %v1238 = vadd.f32 0.0, %v1237
        %v1239 = vpop.f32.mrf.mxu0
        %v1240 = vpop.f32.mrf.mxu0
        %v1241 = vadd.f32 0.0, %v1240
        %v1242 = vpop.f32.mrf.mxu0
        %1243 = vmatprep.mubr.bf16.mxu0 0
        %1244 = vmatmul.mubr.bf16.gmra.mxu0 %v1150
        %v1245 = vpop.f32.mrf.mxu0
        %v1246 = vadd.f32 0.0, %v1245
        %v1247 = vpop.f32.mrf.mxu0
        %v1248 = vpop.f32.mrf.mxu0
        %v1249 = vadd.f32 0.0, %v1248
        %v1250 = vpop.f32.mrf.mxu0
        %1251 = vdwg.mxu0
        %v1252 = vadd.f32 %v1050, %v1190
        %v1253 = vadd.f32 %v1051, %v1193
        %v1254 = vadd.f32 %v1052, %v1198
        %v1255 = vadd.f32 %v1053, %v1201
        %v1256 = vadd.f32 %v1054, %v1206
        %v1257 = vadd.f32 %v1055, %v1209
        %v1258 = vadd.f32 %v1056, %v1214
        %v1259 = vadd.f32 %v1057, %v1217
        %v1260 = vadd.f32 %v1058, %v1222
        %v1261 = vadd.f32 %v1059, %v1225
        %v1262 = vadd.f32 %v1060, %v1230
        %v1263 = vadd.f32 %v1061, %v1233
        %v1264 = vadd.f32 %v1062, %v1238
        %v1265 = vadd.f32 %v1063, %v1241
        %v1266 = vadd.f32 %v1064, %v1246
        %v1267 = vadd.f32 %v1065, %v1249
        %v1268 = vld [vmem:[%s1069] sm:$0xf]
        %v1269 = vld [vmem:[%s1069 + $0x4] sm:$0xf]
        %v1270 = vld [vmem:[%s1069 + $0x8] sm:$0x1]
        %v1271 = vld [vmem:[%s1069 + $0xc] sm:$0xf]
        %v1272 = vld [vmem:[%s1069 + $0x10] sm:$0xf]
        %v1273 = vld [vmem:[%s1069 + $0x14] sm:$0x1]
        %v1274 = vld [vmem:[%s1069 + $0x18] sm:$0xf]
        %v1275 = vld [vmem:[%s1069 + $0x1c] sm:$0xf]
        %v1276 = vld [vmem:[%s1069 + $0x20] sm:$0x1]
        %v1277 = vld [vmem:[%s1069 + $0x24] sm:$0xf]
        %v1278 = vld [vmem:[%s1069 + $0x28] sm:$0xf]
        %v1279 = vld [vmem:[%s1069 + $0x2c] sm:$0x1]
        %v1280 = vld [vmem:[%s1069 + $0x30] sm:$0xf]
        %v1281 = vld [vmem:[%s1069 + $0x34] sm:$0xf]
        %v1282 = vld [vmem:[%s1069 + $0x38] sm:$0x1]
        %v1283 = vld [vmem:[%s1069 + $0x3c] sm:$0xf]
        %v1284 = vld [vmem:[%s1069 + $0x40] sm:$0xf]
        %v1285 = vld [vmem:[%s1069 + $0x44] sm:$0x1]
        %v1286 = vld [vmem:[%s1069 + $0x48] sm:$0xf]
        %v1287 = vld [vmem:[%s1069 + $0x4c] sm:$0xf]
        %v1288 = vld [vmem:[%s1069 + $0x50] sm:$0x1]
        %v1289 = vld [vmem:[%s1069 + $0x54] sm:$0xf]
        %v1290 = vld [vmem:[%s1069 + $0x58] sm:$0xf]
        %v1291 = vld [vmem:[%s1069 + $0x5c] sm:$0x1]
        %v1293 = vshrl.u32 %v1268, 16
        %v1295 = vrot.slane %v1293, 4
        %v1296 = vshll.u32 %v1268, 16
        %v1298 = vrot.slane %v1296, 5
        %v1299 = vor.u32 %v1295, %v1298
        %v1300 = vrot.slane %v1299, 4
        %v1302 = vshll.u32 %v1269, 16
        %v1304 = vrot.slane %v1302, 5
        %v1305 = vsel %vm308, %v1300, %v1304
        %v1306 = vshrl.u32 %v1269, 16
        %v1308 = vrot.slane %v1306, 4
        %v1309 = vor.u32 %v1308, %v1304
        %v1310 = vrot.slane %v1309, 4
        %v1312 = vshll.u32 %v1270, 16
        %v1314 = vrot.slane %v1312, 5
        %v1315 = vsel %vm308, %v1310, %v1314
        %v1317 = vshrl.u32 %v1271, 16
        %v1319 = vrot.slane %v1317, 4
        %v1320 = vshll.u32 %v1271, 16
        %v1322 = vrot.slane %v1320, 5
        %v1323 = vor.u32 %v1319, %v1322
        %v1324 = vrot.slane %v1323, 4
        %v1326 = vshll.u32 %v1272, 16
        %v1328 = vrot.slane %v1326, 5
        %v1329 = vsel %vm308, %v1324, %v1328
        %v1330 = vshrl.u32 %v1272, 16
        %v1332 = vrot.slane %v1330, 4
        %v1333 = vor.u32 %v1332, %v1328
        %v1334 = vrot.slane %v1333, 4
        %v1336 = vshll.u32 %v1273, 16
        %v1338 = vrot.slane %v1336, 5
        %v1339 = vsel %vm308, %v1334, %v1338
        %v1341 = vshrl.u32 %v1274, 16
        %v1343 = vrot.slane %v1341, 4
        %v1344 = vshll.u32 %v1274, 16
        %v1346 = vrot.slane %v1344, 5
        %v1347 = vor.u32 %v1343, %v1346
        %v1348 = vrot.slane %v1347, 4
        %v1350 = vshll.u32 %v1275, 16
        %v1352 = vrot.slane %v1350, 5
        %v1353 = vsel %vm308, %v1348, %v1352
        %v1354 = vshrl.u32 %v1275, 16
        %v1356 = vrot.slane %v1354, 4
        %v1357 = vor.u32 %v1356, %v1352
        %v1358 = vrot.slane %v1357, 4
        %v1360 = vshll.u32 %v1276, 16
        %v1362 = vrot.slane %v1360, 5
        %v1363 = vsel %vm308, %v1358, %v1362
        %v1365 = vshrl.u32 %v1277, 16
        %v1367 = vrot.slane %v1365, 4
        %v1368 = vshll.u32 %v1277, 16
        %v1370 = vrot.slane %v1368, 5
        %v1371 = vor.u32 %v1367, %v1370
        %v1372 = vrot.slane %v1371, 4
        %v1374 = vshll.u32 %v1278, 16
        %v1376 = vrot.slane %v1374, 5
        %v1377 = vsel %vm308, %v1372, %v1376
        %v1378 = vshrl.u32 %v1278, 16
        %v1380 = vrot.slane %v1378, 4
        %v1381 = vor.u32 %v1380, %v1376
        %v1382 = vrot.slane %v1381, 4
        %v1384 = vshll.u32 %v1279, 16
        %v1386 = vrot.slane %v1384, 5
        %v1387 = vsel %vm308, %v1382, %v1386
        %v1389 = vshrl.u32 %v1280, 16
        %v1391 = vrot.slane %v1389, 4
        %v1392 = vshll.u32 %v1280, 16
        %v1394 = vrot.slane %v1392, 5
        %v1395 = vor.u32 %v1391, %v1394
        %v1396 = vrot.slane %v1395, 4
        %v1398 = vshll.u32 %v1281, 16
        %v1400 = vrot.slane %v1398, 5
        %v1401 = vsel %vm308, %v1396, %v1400
        %v1402 = vshrl.u32 %v1281, 16
        %v1404 = vrot.slane %v1402, 4
        %v1405 = vor.u32 %v1404, %v1400
        %v1406 = vrot.slane %v1405, 4
        %v1408 = vshll.u32 %v1282, 16
        %v1410 = vrot.slane %v1408, 5
        %v1411 = vsel %vm308, %v1406, %v1410
        %v1413 = vshrl.u32 %v1283, 16
        %v1415 = vrot.slane %v1413, 4
        %v1416 = vshll.u32 %v1283, 16
        %v1418 = vrot.slane %v1416, 5
        %v1419 = vor.u32 %v1415, %v1418
        %v1420 = vrot.slane %v1419, 4
        %v1422 = vshll.u32 %v1284, 16
        %v1424 = vrot.slane %v1422, 5
        %v1425 = vsel %vm308, %v1420, %v1424
        %v1426 = vshrl.u32 %v1284, 16
        %v1428 = vrot.slane %v1426, 4
        %v1429 = vor.u32 %v1428, %v1424
        %v1430 = vrot.slane %v1429, 4
        %v1432 = vshll.u32 %v1285, 16
        %v1434 = vrot.slane %v1432, 5
        %v1435 = vsel %vm308, %v1430, %v1434
        %v1437 = vshrl.u32 %v1286, 16
        %v1439 = vrot.slane %v1437, 4
        %v1440 = vshll.u32 %v1286, 16
        %v1442 = vrot.slane %v1440, 5
        %v1443 = vor.u32 %v1439, %v1442
        %v1444 = vrot.slane %v1443, 4
        %v1446 = vshll.u32 %v1287, 16
        %v1448 = vrot.slane %v1446, 5
        %v1449 = vsel %vm308, %v1444, %v1448
        %v1450 = vshrl.u32 %v1287, 16
        %v1452 = vrot.slane %v1450, 4
        %v1453 = vor.u32 %v1452, %v1448
        %v1454 = vrot.slane %v1453, 4
        %v1456 = vshll.u32 %v1288, 16
        %v1458 = vrot.slane %v1456, 5
        %v1459 = vsel %vm308, %v1454, %v1458
        %v1461 = vshrl.u32 %v1289, 16
        %v1463 = vrot.slane %v1461, 4
        %v1464 = vshll.u32 %v1289, 16
        %v1466 = vrot.slane %v1464, 5
        %v1467 = vor.u32 %v1463, %v1466
        %v1468 = vrot.slane %v1467, 4
        %v1470 = vshll.u32 %v1290, 16
        %v1472 = vrot.slane %v1470, 5
        %v1473 = vsel %vm308, %v1468, %v1472
        %v1474 = vshrl.u32 %v1290, 16
        %v1476 = vrot.slane %v1474, 4
        %v1477 = vor.u32 %v1476, %v1472
        %v1478 = vrot.slane %v1477, 4
        %v1480 = vshll.u32 %v1291, 16
        %v1482 = vrot.slane %v1480, 5
        %v1483 = vsel %vm308, %v1478, %v1482
        %s1484 = scalar_lea.vmem %s1, 16
        %v1485 = vld [vmem:[%s1484] sm:$0xf]
        %v1486 = vunpack.c.l.b16 %v1305
        %v1487 = vunpack.c.l.b16 %v1315
        %v1488 = vunpack.c.l.b16 %v1329
        %v1489 = vunpack.c.l.b16 %v1339
        %v1490 = vunpack.c.l.b16 %v1353
        %v1491 = vunpack.c.l.b16 %v1363
        %v1492 = vunpack.c.l.b16 %v1377
        %v1493 = vunpack.c.l.b16 %v1387
        %v1494 = vunpack.c.l.b16 %v1401
        %v1495 = vunpack.c.l.b16 %v1411
        %v1496 = vunpack.c.l.b16 %v1425
        %v1497 = vunpack.c.l.b16 %v1435
        %v1498 = vunpack.c.l.b16 %v1449
        %v1499 = vunpack.c.l.b16 %v1459
        %v1500 = vunpack.c.l.b16 %v1473
        %v1501 = vunpack.c.l.b16 %v1483
        %v1502 = vpack.c.b16 %v1487, %v1486
        %v1503 = vpack.c.b16 %v1489, %v1488
        %v1504 = vpack.c.b16 %v1491, %v1490
        %v1505 = vpack.c.b16 %v1493, %v1492
        %v1506 = vpack.c.b16 %v1495, %v1494
        %v1507 = vpack.c.b16 %v1497, %v1496
        %v1508 = vpack.c.b16 %v1499, %v1498
        %v1509 = vpack.c.b16 %v1501, %v1500
        %v1511 = vsel %vm527, %v1502, 0
        %v1514 = vsel %vm527, %v1503, 0
        %v1517 = vsel %vm527, %v1504, 0
        %v1520 = vsel %vm527, %v1505, 0
        %v1523 = vsel %vm527, %v1506, 0
        %v1526 = vsel %vm527, %v1507, 0
        %v1529 = vsel %vm527, %v1508, 0
        %v1532 = vsel %vm527, %v1509, 0
        %v1535 = vsel %vm552, %v1485, 0
        %1537 = vmatprep.subr.bf16.mxu0 0
        %1538 = vmatpush1.bf16.msra.mxu0 0
        %1539 = vmatprep.subr.bf16.mxu0 0
        %1540 = vmatpush1.bf16.msra.mxu0 0
        %1541 = vmatprep.subr.bf16.mxu0 0
        %1542 = vmatpush1.bf16.msra.mxu0 0
        %1543 = vmatprep.subr.bf16.mxu0 0
        %1544 = vmatpush1.bf16.msra.mxu0 0
        %1545 = vmatprep.subr.bf16.mxu0 0
        %1546 = vmatpush1.bf16.msra.mxu0 0
        %1547 = vmatprep.subr.bf16.mxu0 0
        %1548 = vmatpush1.bf16.msra.mxu0 0
        %1549 = vmatprep.subr.bf16.mxu0 0
        %1550 = vmatpush1.bf16.msra.mxu0 0
        %1551 = vmatprep.subr.bf16.mxu0 0
        %1552 = vmatpush1.bf16.msra.mxu0 %v1535
        %1553 = vmatprep.subr.bf16.mxu0 0
        %1554 = vmatpush2.bf16.msra.mxu0 0
        %1555 = vmatprep.subr.bf16.mxu0 0
        %1556 = vmatpush2.bf16.msra.mxu0 0
        %1557 = vmatprep.subr.bf16.mxu0 0
        %1558 = vmatpush2.bf16.msra.mxu0 0
        %1559 = vmatprep.subr.bf16.mxu0 0
        %1560 = vmatpush2.bf16.msra.mxu0 0
        %1561 = vmatprep.subr.bf16.mxu0 0
        %1562 = vmatpush2.bf16.msra.mxu0 0
        %1563 = vmatprep.subr.bf16.mxu0 0
        %1564 = vmatpush2.bf16.msra.mxu0 0
        %1565 = vmatprep.subr.bf16.mxu0 0
        %1566 = vmatpush2.bf16.msra.mxu0 0
        %1567 = vmatprep.subr.bf16.mxu0 0
        %1568 = vmatpush2.bf16.msra.mxu0 0
        %1569 = vmatprep.mubr.bf16.mxu0 0
        %1570 = vmatmul.mubr.bf16.gmra.mxu0 %v1511
        %v1571 = vpop.f32.mrf.mxu0
        %v1572 = vadd.f32 0.0, %v1571
        %v1573 = vpop.f32.mrf.mxu0
        %v1574 = vpop.f32.mrf.mxu0
        %v1575 = vadd.f32 0.0, %v1574
        %v1576 = vpop.f32.mrf.mxu0
        %1577 = vmatprep.mubr.bf16.mxu0 0
        %1578 = vmatmul.mubr.bf16.gmra.mxu0 %v1514
        %v1579 = vpop.f32.mrf.mxu0
        %v1580 = vadd.f32 0.0, %v1579
        %v1581 = vpop.f32.mrf.mxu0
        %v1582 = vpop.f32.mrf.mxu0
        %v1583 = vadd.f32 0.0, %v1582
        %v1584 = vpop.f32.mrf.mxu0
        %1585 = vmatprep.mubr.bf16.mxu0 0
        %1586 = vmatmul.mubr.bf16.gmra.mxu0 %v1517
        %v1587 = vpop.f32.mrf.mxu0
        %v1588 = vadd.f32 0.0, %v1587
        %v1589 = vpop.f32.mrf.mxu0
        %v1590 = vpop.f32.mrf.mxu0
        %v1591 = vadd.f32 0.0, %v1590
        %v1592 = vpop.f32.mrf.mxu0
        %1593 = vmatprep.mubr.bf16.mxu0 0
        %1594 = vmatmul.mubr.bf16.gmra.mxu0 %v1520
        %v1595 = vpop.f32.mrf.mxu0
        %v1596 = vadd.f32 0.0, %v1595
        %v1597 = vpop.f32.mrf.mxu0
        %v1598 = vpop.f32.mrf.mxu0
        %v1599 = vadd.f32 0.0, %v1598
        %v1600 = vpop.f32.mrf.mxu0
        %1601 = vmatprep.mubr.bf16.mxu0 0
        %1602 = vmatmul.mubr.bf16.gmra.mxu0 %v1523
        %v1603 = vpop.f32.mrf.mxu0
        %v1604 = vadd.f32 0.0, %v1603
        %v1605 = vpop.f32.mrf.mxu0
        %v1606 = vpop.f32.mrf.mxu0
        %v1607 = vadd.f32 0.0, %v1606
        %v1608 = vpop.f32.mrf.mxu0
        %1609 = vmatprep.mubr.bf16.mxu0 0
        %1610 = vmatmul.mubr.bf16.gmra.mxu0 %v1526
        %v1611 = vpop.f32.mrf.mxu0
        %v1612 = vadd.f32 0.0, %v1611
        %v1613 = vpop.f32.mrf.mxu0
        %v1614 = vpop.f32.mrf.mxu0
        %v1615 = vadd.f32 0.0, %v1614
        %v1616 = vpop.f32.mrf.mxu0
        %1617 = vmatprep.mubr.bf16.mxu0 0
        %1618 = vmatmul.mubr.bf16.gmra.mxu0 %v1529
        %v1619 = vpop.f32.mrf.mxu0
        %v1620 = vadd.f32 0.0, %v1619
        %v1621 = vpop.f32.mrf.mxu0
        %v1622 = vpop.f32.mrf.mxu0
        %v1623 = vadd.f32 0.0, %v1622
        %v1624 = vpop.f32.mrf.mxu0
        %1625 = vmatprep.mubr.bf16.mxu0 0
        %1626 = vmatmul.mubr.bf16.gmra.mxu0 %v1532
        %v1627 = vpop.f32.mrf.mxu0
        %v1628 = vadd.f32 0.0, %v1627
        %v1629 = vpop.f32.mrf.mxu0
        %v1630 = vpop.f32.mrf.mxu0
        %v1631 = vadd.f32 0.0, %v1630
        %v1632 = vpop.f32.mrf.mxu0
        %1633 = vdwg.mxu0
        %v1634 = vadd.f32 %v1252, %v1572
        %v1635 = vadd.f32 %v1253, %v1575
        %v1636 = vadd.f32 %v1254, %v1580
        %v1637 = vadd.f32 %v1255, %v1583
        %v1638 = vadd.f32 %v1256, %v1588
        %v1639 = vadd.f32 %v1257, %v1591
        %v1640 = vadd.f32 %v1258, %v1596
        %v1641 = vadd.f32 %v1259, %v1599
        %v1642 = vadd.f32 %v1260, %v1604
        %v1643 = vadd.f32 %v1261, %v1607
        %v1644 = vadd.f32 %v1262, %v1612
        %v1645 = vadd.f32 %v1263, %v1615
        %v1646 = vadd.f32 %v1264, %v1620
        %v1647 = vadd.f32 %v1265, %v1623
        %v1648 = vadd.f32 %v1266, %v1628
        %v1649 = vadd.f32 %v1267, %v1631
        %v1650 = vld [vmem:[%s1069] sm:$0xe]
        %v1651 = vld [vmem:[%s1069 + $0xc] sm:$0xe]
        %v1652 = vld [vmem:[%s1069 + $0x18] sm:$0xe]
        %v1653 = vld [vmem:[%s1069 + $0x24] sm:$0xe]
        %v1654 = vld [vmem:[%s1069 + $0x30] sm:$0xe]
        %v1655 = vld [vmem:[%s1069 + $0x3c] sm:$0xe]
        %v1656 = vld [vmem:[%s1069 + $0x48] sm:$0xe]
        %v1657 = vld [vmem:[%s1069 + $0x54] sm:$0xe]
        %v1682 = vrot.slane %v1650, 5
        %v1683 = vrot.slane %v1682, 4
        %v1684 = vrot.slane %v1269, 5
        %v1685 = vsel %vm843, %v1683, %v1684
        %v1686 = vrot.slane %v1684, 4
        %v1687 = vrot.slane %v1270, 5
        %v1688 = vsel %vm843, %v1686, %v1687
        %v1689 = vrot.slane %v1651, 5
        %v1690 = vrot.slane %v1689, 4
        %v1691 = vrot.slane %v1272, 5
        %v1692 = vsel %vm843, %v1690, %v1691
        %v1693 = vrot.slane %v1691, 4
        %v1694 = vrot.slane %v1273, 5
        %v1695 = vsel %vm843, %v1693, %v1694
        %v1696 = vrot.slane %v1652, 5
        %v1697 = vrot.slane %v1696, 4
        %v1698 = vrot.slane %v1275, 5
        %v1699 = vsel %vm843, %v1697, %v1698
        %v1700 = vrot.slane %v1698, 4
        %v1701 = vrot.slane %v1276, 5
        %v1702 = vsel %vm843, %v1700, %v1701
        %v1703 = vrot.slane %v1653, 5
        %v1704 = vrot.slane %v1703, 4
        %v1705 = vrot.slane %v1278, 5
        %v1706 = vsel %vm843, %v1704, %v1705
        %v1707 = vrot.slane %v1705, 4
        %v1708 = vrot.slane %v1279, 5
        %v1709 = vsel %vm843, %v1707, %v1708
        %v1710 = vrot.slane %v1654, 5
        %v1711 = vrot.slane %v1710, 4
        %v1712 = vrot.slane %v1281, 5
        %v1713 = vsel %vm843, %v1711, %v1712
        %v1714 = vrot.slane %v1712, 4
        %v1715 = vrot.slane %v1282, 5
        %v1716 = vsel %vm843, %v1714, %v1715
        %v1717 = vrot.slane %v1655, 5
        %v1718 = vrot.slane %v1717, 4
        %v1719 = vrot.slane %v1284, 5
        %v1720 = vsel %vm843, %v1718, %v1719
        %v1721 = vrot.slane %v1719, 4
        %v1722 = vrot.slane %v1285, 5
        %v1723 = vsel %vm843, %v1721, %v1722
        %v1724 = vrot.slane %v1656, 5
        %v1725 = vrot.slane %v1724, 4
        %v1726 = vrot.slane %v1287, 5
        %v1727 = vsel %vm843, %v1725, %v1726
        %v1728 = vrot.slane %v1726, 4
        %v1729 = vrot.slane %v1288, 5
        %v1730 = vsel %vm843, %v1728, %v1729
        %v1731 = vrot.slane %v1657, 5
        %v1732 = vrot.slane %v1731, 4
        %v1733 = vrot.slane %v1290, 5
        %v1734 = vsel %vm843, %v1732, %v1733
        %v1735 = vrot.slane %v1733, 4
        %v1736 = vrot.slane %v1291, 5
        %v1737 = vsel %vm843, %v1735, %v1736
        %s1738 = scalar_lea.vmem %s1, 20
        %v1739 = vld [vmem:[%s1738] sm:$0xf]
        %v1740 = vunpack.c.l.b16 %v1685
        %v1741 = vunpack.c.l.b16 %v1688
        %v1742 = vunpack.c.l.b16 %v1692
        %v1743 = vunpack.c.l.b16 %v1695
        %v1744 = vunpack.c.l.b16 %v1699
        %v1745 = vunpack.c.l.b16 %v1702
        %v1746 = vunpack.c.l.b16 %v1706
        %v1747 = vunpack.c.l.b16 %v1709
        %v1748 = vunpack.c.l.b16 %v1713
        %v1749 = vunpack.c.l.b16 %v1716
        %v1750 = vunpack.c.l.b16 %v1720
        %v1751 = vunpack.c.l.b16 %v1723
        %v1752 = vunpack.c.l.b16 %v1727
        %v1753 = vunpack.c.l.b16 %v1730
        %v1754 = vunpack.c.l.b16 %v1734
        %v1755 = vunpack.c.l.b16 %v1737
        %v1756 = vpack.c.b16 %v1741, %v1740
        %v1757 = vpack.c.b16 %v1743, %v1742
        %v1758 = vpack.c.b16 %v1745, %v1744
        %v1759 = vpack.c.b16 %v1747, %v1746
        %v1760 = vpack.c.b16 %v1749, %v1748
        %v1761 = vpack.c.b16 %v1751, %v1750
        %v1762 = vpack.c.b16 %v1753, %v1752
        %v1763 = vpack.c.b16 %v1755, %v1754
        %v1765 = vsel %vm527, %v1756, 0
        %v1768 = vsel %vm527, %v1757, 0
        %v1771 = vsel %vm527, %v1758, 0
        %v1774 = vsel %vm527, %v1759, 0
        %v1777 = vsel %vm527, %v1760, 0
        %v1780 = vsel %vm527, %v1761, 0
        %v1783 = vsel %vm527, %v1762, 0
        %v1786 = vsel %vm527, %v1763, 0
        %v1789 = vsel %vm552, %v1739, 0
        %1791 = vmatprep.subr.bf16.mxu0 0
        %1792 = vmatpush1.bf16.msra.mxu0 0
        %1793 = vmatprep.subr.bf16.mxu0 0
        %1794 = vmatpush1.bf16.msra.mxu0 0
        %1795 = vmatprep.subr.bf16.mxu0 0
        %1796 = vmatpush1.bf16.msra.mxu0 0
        %1797 = vmatprep.subr.bf16.mxu0 0
        %1798 = vmatpush1.bf16.msra.mxu0 0
        %1799 = vmatprep.subr.bf16.mxu0 0
        %1800 = vmatpush1.bf16.msra.mxu0 0
        %1801 = vmatprep.subr.bf16.mxu0 0
        %1802 = vmatpush1.bf16.msra.mxu0 0
        %1803 = vmatprep.subr.bf16.mxu0 0
        %1804 = vmatpush1.bf16.msra.mxu0 0
        %1805 = vmatprep.subr.bf16.mxu0 0
        %1806 = vmatpush1.bf16.msra.mxu0 %v1789
        %1807 = vmatprep.subr.bf16.mxu0 0
        %1808 = vmatpush2.bf16.msra.mxu0 0
        %1809 = vmatprep.subr.bf16.mxu0 0
        %1810 = vmatpush2.bf16.msra.mxu0 0
        %1811 = vmatprep.subr.bf16.mxu0 0
        %1812 = vmatpush2.bf16.msra.mxu0 0
        %1813 = vmatprep.subr.bf16.mxu0 0
        %1814 = vmatpush2.bf16.msra.mxu0 0
        %1815 = vmatprep.subr.bf16.mxu0 0
        %1816 = vmatpush2.bf16.msra.mxu0 0
        %1817 = vmatprep.subr.bf16.mxu0 0
        %1818 = vmatpush2.bf16.msra.mxu0 0
        %1819 = vmatprep.subr.bf16.mxu0 0
        %1820 = vmatpush2.bf16.msra.mxu0 0
        %1821 = vmatprep.subr.bf16.mxu0 0
        %1822 = vmatpush2.bf16.msra.mxu0 0
        %1823 = vmatprep.mubr.bf16.mxu0 0
        %1824 = vmatmul.mubr.bf16.gmra.mxu0 %v1765
        %v1825 = vpop.f32.mrf.mxu0
        %v1826 = vadd.f32 0.0, %v1825
        %v1827 = vpop.f32.mrf.mxu0
        %v1828 = vpop.f32.mrf.mxu0
        %v1829 = vadd.f32 0.0, %v1828
        %v1830 = vpop.f32.mrf.mxu0
        %1831 = vmatprep.mubr.bf16.mxu0 0
        %1832 = vmatmul.mubr.bf16.gmra.mxu0 %v1768
        %v1833 = vpop.f32.mrf.mxu0
        %v1834 = vadd.f32 0.0, %v1833
        %v1835 = vpop.f32.mrf.mxu0
        %v1836 = vpop.f32.mrf.mxu0
        %v1837 = vadd.f32 0.0, %v1836
        %v1838 = vpop.f32.mrf.mxu0
        %1839 = vmatprep.mubr.bf16.mxu0 0
        %1840 = vmatmul.mubr.bf16.gmra.mxu0 %v1771
        %v1841 = vpop.f32.mrf.mxu0
        %v1842 = vadd.f32 0.0, %v1841
        %v1843 = vpop.f32.mrf.mxu0
        %v1844 = vpop.f32.mrf.mxu0
        %v1845 = vadd.f32 0.0, %v1844
        %v1846 = vpop.f32.mrf.mxu0
        %1847 = vmatprep.mubr.bf16.mxu0 0
        %1848 = vmatmul.mubr.bf16.gmra.mxu0 %v1774
        %v1849 = vpop.f32.mrf.mxu0
        %v1850 = vadd.f32 0.0, %v1849
        %v1851 = vpop.f32.mrf.mxu0
        %v1852 = vpop.f32.mrf.mxu0
        %v1853 = vadd.f32 0.0, %v1852
        %v1854 = vpop.f32.mrf.mxu0
        %1855 = vmatprep.mubr.bf16.mxu0 0
        %1856 = vmatmul.mubr.bf16.gmra.mxu0 %v1777
        %v1857 = vpop.f32.mrf.mxu0
        %v1858 = vadd.f32 0.0, %v1857
        %v1859 = vpop.f32.mrf.mxu0
        %v1860 = vpop.f32.mrf.mxu0
        %v1861 = vadd.f32 0.0, %v1860
        %v1862 = vpop.f32.mrf.mxu0
        %1863 = vmatprep.mubr.bf16.mxu0 0
        %1864 = vmatmul.mubr.bf16.gmra.mxu0 %v1780
        %v1865 = vpop.f32.mrf.mxu0
        %v1866 = vadd.f32 0.0, %v1865
        %v1867 = vpop.f32.mrf.mxu0
        %v1868 = vpop.f32.mrf.mxu0
        %v1869 = vadd.f32 0.0, %v1868
        %v1870 = vpop.f32.mrf.mxu0
        %1871 = vmatprep.mubr.bf16.mxu0 0
        %1872 = vmatmul.mubr.bf16.gmra.mxu0 %v1783
        %v1873 = vpop.f32.mrf.mxu0
        %v1874 = vadd.f32 0.0, %v1873
        %v1875 = vpop.f32.mrf.mxu0
        %v1876 = vpop.f32.mrf.mxu0
        %v1877 = vadd.f32 0.0, %v1876
        %v1878 = vpop.f32.mrf.mxu0
        %1879 = vmatprep.mubr.bf16.mxu0 0
        %1880 = vmatmul.mubr.bf16.gmra.mxu0 %v1786
        %v1881 = vpop.f32.mrf.mxu0
        %v1882 = vadd.f32 0.0, %v1881
        %v1883 = vpop.f32.mrf.mxu0
        %v1884 = vpop.f32.mrf.mxu0
        %v1885 = vadd.f32 0.0, %v1884
        %v1886 = vpop.f32.mrf.mxu0
        %1887 = vdwg.mxu0
        %v1888 = vadd.f32 %v1634, %v1826
        %v1889 = vadd.f32 %v1635, %v1829
        %v1890 = vadd.f32 %v1636, %v1834
        %v1891 = vadd.f32 %v1637, %v1837
        %v1892 = vadd.f32 %v1638, %v1842
        %v1893 = vadd.f32 %v1639, %v1845
        %v1894 = vadd.f32 %v1640, %v1850
        %v1895 = vadd.f32 %v1641, %v1853
        %v1896 = vadd.f32 %v1642, %v1858
        %v1897 = vadd.f32 %v1643, %v1861
        %v1898 = vadd.f32 %v1644, %v1866
        %v1899 = vadd.f32 %v1645, %v1869
        %v1900 = vadd.f32 %v1646, %v1874
        %v1901 = vadd.f32 %v1647, %v1877
        %v1902 = vadd.f32 %v1648, %v1882
        %v1903 = vadd.f32 %v1649, %v1885
        %s1904 = sadd.s32 %s277, 2
        %s1905 = smul.u32 %s1904, 3
        %s1906 = smul.addr %s1905, 4
        %s1907 = scalar_lea.vmem %s270, %s1906
        %v1908 = vld [vmem:[%s1907] sm:$0xf]
        %v1909 = vld [vmem:[%s1907 + $0x4] sm:$0xf]
        %v1910 = vld [vmem:[%s1907 + $0xc] sm:$0xf]
        %v1911 = vld [vmem:[%s1907 + $0x10] sm:$0xf]
        %v1912 = vld [vmem:[%s1907 + $0x18] sm:$0xf]
        %v1913 = vld [vmem:[%s1907 + $0x1c] sm:$0xf]
        %v1914 = vld [vmem:[%s1907 + $0x24] sm:$0xf]
        %v1915 = vld [vmem:[%s1907 + $0x28] sm:$0xf]
        %v1916 = vld [vmem:[%s1907 + $0x30] sm:$0xf]
        %v1917 = vld [vmem:[%s1907 + $0x34] sm:$0xf]
        %v1918 = vld [vmem:[%s1907 + $0x3c] sm:$0xf]
        %v1919 = vld [vmem:[%s1907 + $0x40] sm:$0xf]
        %v1920 = vld [vmem:[%s1907 + $0x48] sm:$0xf]
        %v1921 = vld [vmem:[%s1907 + $0x4c] sm:$0xf]
        %v1922 = vld [vmem:[%s1907 + $0x54] sm:$0xf]
        %v1923 = vld [vmem:[%s1907 + $0x58] sm:$0xf]
        %s1924 = scalar_lea.vmem %s1, 24
        %v1925 = vld [vmem:[%s1924] sm:$0xf]
        %v1942 = vunpack.c.l.b16 %v1908
        %v1943 = vunpack.c.l.b16 %v1909
        %v1944 = vunpack.c.l.b16 %v1910
        %v1945 = vunpack.c.l.b16 %v1911
        %v1946 = vunpack.c.l.b16 %v1912
        %v1947 = vunpack.c.l.b16 %v1913
        %v1948 = vunpack.c.l.b16 %v1914
        %v1949 = vunpack.c.l.b16 %v1915
        %v1950 = vunpack.c.l.b16 %v1916
        %v1951 = vunpack.c.l.b16 %v1917
        %v1952 = vunpack.c.l.b16 %v1918
        %v1953 = vunpack.c.l.b16 %v1919
        %v1954 = vunpack.c.l.b16 %v1920
        %v1955 = vunpack.c.l.b16 %v1921
        %v1956 = vunpack.c.l.b16 %v1922
        %v1957 = vunpack.c.l.b16 %v1923
        %v1958 = vpack.c.b16 %v1943, %v1942
        %v1959 = vpack.c.b16 %v1945, %v1944
        %v1960 = vpack.c.b16 %v1947, %v1946
        %v1961 = vpack.c.b16 %v1949, %v1948
        %v1962 = vpack.c.b16 %v1951, %v1950
        %v1963 = vpack.c.b16 %v1953, %v1952
        %v1964 = vpack.c.b16 %v1955, %v1954
        %v1965 = vpack.c.b16 %v1957, %v1956
        %v1967 = vsel %vm527, %v1958, 0
        %v1970 = vsel %vm527, %v1959, 0
        %v1973 = vsel %vm527, %v1960, 0
        %v1976 = vsel %vm527, %v1961, 0
        %v1979 = vsel %vm527, %v1962, 0
        %v1982 = vsel %vm527, %v1963, 0
        %v1985 = vsel %vm527, %v1964, 0
        %v1988 = vsel %vm527, %v1965, 0
        %v1991 = vsel %vm552, %v1925, 0
        %1993 = vmatprep.subr.bf16.mxu0 0
        %1994 = vmatpush1.bf16.msra.mxu0 0
        %1995 = vmatprep.subr.bf16.mxu0 0
        %1996 = vmatpush1.bf16.msra.mxu0 0
        %1997 = vmatprep.subr.bf16.mxu0 0
        %1998 = vmatpush1.bf16.msra.mxu0 0
        %1999 = vmatprep.subr.bf16.mxu0 0
        %2000 = vmatpush1.bf16.msra.mxu0 0
        %2001 = vmatprep.subr.bf16.mxu0 0
        %2002 = vmatpush1.bf16.msra.mxu0 0
        %2003 = vmatprep.subr.bf16.mxu0 0
        %2004 = vmatpush1.bf16.msra.mxu0 0
        %2005 = vmatprep.subr.bf16.mxu0 0
        %2006 = vmatpush1.bf16.msra.mxu0 0
        %2007 = vmatprep.subr.bf16.mxu0 0
        %2008 = vmatpush1.bf16.msra.mxu0 %v1991
        %2009 = vmatprep.subr.bf16.mxu0 0
        %2010 = vmatpush2.bf16.msra.mxu0 0
        %2011 = vmatprep.subr.bf16.mxu0 0
        %2012 = vmatpush2.bf16.msra.mxu0 0
        %2013 = vmatprep.subr.bf16.mxu0 0
        %2014 = vmatpush2.bf16.msra.mxu0 0
        %2015 = vmatprep.subr.bf16.mxu0 0
        %2016 = vmatpush2.bf16.msra.mxu0 0
        %2017 = vmatprep.subr.bf16.mxu0 0
        %2018 = vmatpush2.bf16.msra.mxu0 0
        %2019 = vmatprep.subr.bf16.mxu0 0
        %2020 = vmatpush2.bf16.msra.mxu0 0
        %2021 = vmatprep.subr.bf16.mxu0 0
        %2022 = vmatpush2.bf16.msra.mxu0 0
        %2023 = vmatprep.subr.bf16.mxu0 0
        %2024 = vmatpush2.bf16.msra.mxu0 0
        %2025 = vmatprep.mubr.bf16.mxu0 0
        %2026 = vmatmul.mubr.bf16.gmra.mxu0 %v1967
        %v2027 = vpop.f32.mrf.mxu0
        %v2028 = vadd.f32 0.0, %v2027
        %v2029 = vpop.f32.mrf.mxu0
        %v2030 = vpop.f32.mrf.mxu0
        %v2031 = vadd.f32 0.0, %v2030
        %v2032 = vpop.f32.mrf.mxu0
        %2033 = vmatprep.mubr.bf16.mxu0 0
        %2034 = vmatmul.mubr.bf16.gmra.mxu0 %v1970
        %v2035 = vpop.f32.mrf.mxu0
        %v2036 = vadd.f32 0.0, %v2035
        %v2037 = vpop.f32.mrf.mxu0
        %v2038 = vpop.f32.mrf.mxu0
        %v2039 = vadd.f32 0.0, %v2038
        %v2040 = vpop.f32.mrf.mxu0
        %2041 = vmatprep.mubr.bf16.mxu0 0
        %2042 = vmatmul.mubr.bf16.gmra.mxu0 %v1973
        %v2043 = vpop.f32.mrf.mxu0
        %v2044 = vadd.f32 0.0, %v2043
        %v2045 = vpop.f32.mrf.mxu0
        %v2046 = vpop.f32.mrf.mxu0
        %v2047 = vadd.f32 0.0, %v2046
        %v2048 = vpop.f32.mrf.mxu0
        %2049 = vmatprep.mubr.bf16.mxu0 0
        %2050 = vmatmul.mubr.bf16.gmra.mxu0 %v1976
        %v2051 = vpop.f32.mrf.mxu0
        %v2052 = vadd.f32 0.0, %v2051
        %v2053 = vpop.f32.mrf.mxu0
        %v2054 = vpop.f32.mrf.mxu0
        %v2055 = vadd.f32 0.0, %v2054
        %v2056 = vpop.f32.mrf.mxu0
        %2057 = vmatprep.mubr.bf16.mxu0 0
        %2058 = vmatmul.mubr.bf16.gmra.mxu0 %v1979
        %v2059 = vpop.f32.mrf.mxu0
        %v2060 = vadd.f32 0.0, %v2059
        %v2061 = vpop.f32.mrf.mxu0
        %v2062 = vpop.f32.mrf.mxu0
        %v2063 = vadd.f32 0.0, %v2062
        %v2064 = vpop.f32.mrf.mxu0
        %2065 = vmatprep.mubr.bf16.mxu0 0
        %2066 = vmatmul.mubr.bf16.gmra.mxu0 %v1982
        %v2067 = vpop.f32.mrf.mxu0
        %v2068 = vadd.f32 0.0, %v2067
        %v2069 = vpop.f32.mrf.mxu0
        %v2070 = vpop.f32.mrf.mxu0
        %v2071 = vadd.f32 0.0, %v2070
        %v2072 = vpop.f32.mrf.mxu0
        %2073 = vmatprep.mubr.bf16.mxu0 0
        %2074 = vmatmul.mubr.bf16.gmra.mxu0 %v1985
        %v2075 = vpop.f32.mrf.mxu0
        %v2076 = vadd.f32 0.0, %v2075
        %v2077 = vpop.f32.mrf.mxu0
        %v2078 = vpop.f32.mrf.mxu0
        %v2079 = vadd.f32 0.0, %v2078
        %v2080 = vpop.f32.mrf.mxu0
        %2081 = vmatprep.mubr.bf16.mxu0 0
        %2082 = vmatmul.mubr.bf16.gmra.mxu0 %v1988
        %v2083 = vpop.f32.mrf.mxu0
        %v2084 = vadd.f32 0.0, %v2083
        %v2085 = vpop.f32.mrf.mxu0
        %v2086 = vpop.f32.mrf.mxu0
        %v2087 = vadd.f32 0.0, %v2086
        %v2088 = vpop.f32.mrf.mxu0
        %2089 = vdwg.mxu0
        %v2090 = vadd.f32 %v1888, %v2028
        %v2091 = vadd.f32 %v1889, %v2031
        %v2092 = vadd.f32 %v1890, %v2036
        %v2093 = vadd.f32 %v1891, %v2039
        %v2094 = vadd.f32 %v1892, %v2044
        %v2095 = vadd.f32 %v1893, %v2047
        %v2096 = vadd.f32 %v1894, %v2052
        %v2097 = vadd.f32 %v1895, %v2055
        %v2098 = vadd.f32 %v1896, %v2060
        %v2099 = vadd.f32 %v1897, %v2063
        %v2100 = vadd.f32 %v1898, %v2068
        %v2101 = vadd.f32 %v1899, %v2071
        %v2102 = vadd.f32 %v1900, %v2076
        %v2103 = vadd.f32 %v1901, %v2079
        %v2104 = vadd.f32 %v1902, %v2084
        %v2105 = vadd.f32 %v1903, %v2087
        %v2106 = vld [vmem:[%s1907] sm:$0xf]
        %v2107 = vld [vmem:[%s1907 + $0x4] sm:$0xf]
        %v2108 = vld [vmem:[%s1907 + $0x8] sm:$0x1]
        %v2109 = vld [vmem:[%s1907 + $0xc] sm:$0xf]
        %v2110 = vld [vmem:[%s1907 + $0x10] sm:$0xf]
        %v2111 = vld [vmem:[%s1907 + $0x14] sm:$0x1]
        %v2112 = vld [vmem:[%s1907 + $0x18] sm:$0xf]
        %v2113 = vld [vmem:[%s1907 + $0x1c] sm:$0xf]
        %v2114 = vld [vmem:[%s1907 + $0x20] sm:$0x1]
        %v2115 = vld [vmem:[%s1907 + $0x24] sm:$0xf]
        %v2116 = vld [vmem:[%s1907 + $0x28] sm:$0xf]
        %v2117 = vld [vmem:[%s1907 + $0x2c] sm:$0x1]
        %v2118 = vld [vmem:[%s1907 + $0x30] sm:$0xf]
        %v2119 = vld [vmem:[%s1907 + $0x34] sm:$0xf]
        %v2120 = vld [vmem:[%s1907 + $0x38] sm:$0x1]
        %v2121 = vld [vmem:[%s1907 + $0x3c] sm:$0xf]
        %v2122 = vld [vmem:[%s1907 + $0x40] sm:$0xf]
        %v2123 = vld [vmem:[%s1907 + $0x44] sm:$0x1]
        %v2124 = vld [vmem:[%s1907 + $0x48] sm:$0xf]
        %v2125 = vld [vmem:[%s1907 + $0x4c] sm:$0xf]
        %v2126 = vld [vmem:[%s1907 + $0x50] sm:$0x1]
        %v2127 = vld [vmem:[%s1907 + $0x54] sm:$0xf]
        %v2128 = vld [vmem:[%s1907 + $0x58] sm:$0xf]
        %v2129 = vld [vmem:[%s1907 + $0x5c] sm:$0x1]
        %v2131 = vshrl.u32 %v2106, 16
        %v2133 = vrot.slane %v2131, 4
        %v2134 = vshll.u32 %v2106, 16
        %v2136 = vrot.slane %v2134, 5
        %v2137 = vor.u32 %v2133, %v2136
        %v2138 = vrot.slane %v2137, 4
        %v2140 = vshll.u32 %v2107, 16
        %v2142 = vrot.slane %v2140, 5
        %v2143 = vsel %vm308, %v2138, %v2142
        %v2144 = vshrl.u32 %v2107, 16
        %v2146 = vrot.slane %v2144, 4
        %v2147 = vor.u32 %v2146, %v2142
        %v2148 = vrot.slane %v2147, 4
        %v2150 = vshll.u32 %v2108, 16
        %v2152 = vrot.slane %v2150, 5
        %v2153 = vsel %vm308, %v2148, %v2152
        %v2155 = vshrl.u32 %v2109, 16
        %v2157 = vrot.slane %v2155, 4
        %v2158 = vshll.u32 %v2109, 16
        %v2160 = vrot.slane %v2158, 5
        %v2161 = vor.u32 %v2157, %v2160
        %v2162 = vrot.slane %v2161, 4
        %v2164 = vshll.u32 %v2110, 16
        %v2166 = vrot.slane %v2164, 5
        %v2167 = vsel %vm308, %v2162, %v2166
        %v2168 = vshrl.u32 %v2110, 16
        %v2170 = vrot.slane %v2168, 4
        %v2171 = vor.u32 %v2170, %v2166
        %v2172 = vrot.slane %v2171, 4
        %v2174 = vshll.u32 %v2111, 16
        %v2176 = vrot.slane %v2174, 5
        %v2177 = vsel %vm308, %v2172, %v2176
        %v2179 = vshrl.u32 %v2112, 16
        %v2181 = vrot.slane %v2179, 4
        %v2182 = vshll.u32 %v2112, 16
        %v2184 = vrot.slane %v2182, 5
        %v2185 = vor.u32 %v2181, %v2184
        %v2186 = vrot.slane %v2185, 4
        %v2188 = vshll.u32 %v2113, 16
        %v2190 = vrot.slane %v2188, 5
        %v2191 = vsel %vm308, %v2186, %v2190
        %v2192 = vshrl.u32 %v2113, 16
        %v2194 = vrot.slane %v2192, 4
        %v2195 = vor.u32 %v2194, %v2190
        %v2196 = vrot.slane %v2195, 4
        %v2198 = vshll.u32 %v2114, 16
        %v2200 = vrot.slane %v2198, 5
        %v2201 = vsel %vm308, %v2196, %v2200
        %v2203 = vshrl.u32 %v2115, 16
        %v2205 = vrot.slane %v2203, 4
        %v2206 = vshll.u32 %v2115, 16
        %v2208 = vrot.slane %v2206, 5
        %v2209 = vor.u32 %v2205, %v2208
        %v2210 = vrot.slane %v2209, 4
        %v2212 = vshll.u32 %v2116, 16
        %v2214 = vrot.slane %v2212, 5
        %v2215 = vsel %vm308, %v2210, %v2214
        %v2216 = vshrl.u32 %v2116, 16
        %v2218 = vrot.slane %v2216, 4
        %v2219 = vor.u32 %v2218, %v2214
        %v2220 = vrot.slane %v2219, 4
        %v2222 = vshll.u32 %v2117, 16
        %v2224 = vrot.slane %v2222, 5
        %v2225 = vsel %vm308, %v2220, %v2224
        %v2227 = vshrl.u32 %v2118, 16
        %v2229 = vrot.slane %v2227, 4
        %v2230 = vshll.u32 %v2118, 16
        %v2232 = vrot.slane %v2230, 5
        %v2233 = vor.u32 %v2229, %v2232
        %v2234 = vrot.slane %v2233, 4
        %v2236 = vshll.u32 %v2119, 16
        %v2238 = vrot.slane %v2236, 5
        %v2239 = vsel %vm308, %v2234, %v2238
        %v2240 = vshrl.u32 %v2119, 16
        %v2242 = vrot.slane %v2240, 4
        %v2243 = vor.u32 %v2242, %v2238
        %v2244 = vrot.slane %v2243, 4
        %v2246 = vshll.u32 %v2120, 16
        %v2248 = vrot.slane %v2246, 5
        %v2249 = vsel %vm308, %v2244, %v2248
        %v2251 = vshrl.u32 %v2121, 16
        %v2253 = vrot.slane %v2251, 4
        %v2254 = vshll.u32 %v2121, 16
        %v2256 = vrot.slane %v2254, 5
        %v2257 = vor.u32 %v2253, %v2256
        %v2258 = vrot.slane %v2257, 4
        %v2260 = vshll.u32 %v2122, 16
        %v2262 = vrot.slane %v2260, 5
        %v2263 = vsel %vm308, %v2258, %v2262
        %v2264 = vshrl.u32 %v2122, 16
        %v2266 = vrot.slane %v2264, 4
        %v2267 = vor.u32 %v2266, %v2262
        %v2268 = vrot.slane %v2267, 4
        %v2270 = vshll.u32 %v2123, 16
        %v2272 = vrot.slane %v2270, 5
        %v2273 = vsel %vm308, %v2268, %v2272
        %v2275 = vshrl.u32 %v2124, 16
        %v2277 = vrot.slane %v2275, 4
        %v2278 = vshll.u32 %v2124, 16
        %v2280 = vrot.slane %v2278, 5
        %v2281 = vor.u32 %v2277, %v2280
        %v2282 = vrot.slane %v2281, 4
        %v2284 = vshll.u32 %v2125, 16
        %v2286 = vrot.slane %v2284, 5
        %v2287 = vsel %vm308, %v2282, %v2286
        %v2288 = vshrl.u32 %v2125, 16
        %v2290 = vrot.slane %v2288, 4
        %v2291 = vor.u32 %v2290, %v2286
        %v2292 = vrot.slane %v2291, 4
        %v2294 = vshll.u32 %v2126, 16
        %v2296 = vrot.slane %v2294, 5
        %v2297 = vsel %vm308, %v2292, %v2296
        %v2299 = vshrl.u32 %v2127, 16
        %v2301 = vrot.slane %v2299, 4
        %v2302 = vshll.u32 %v2127, 16
        %v2304 = vrot.slane %v2302, 5
        %v2305 = vor.u32 %v2301, %v2304
        %v2306 = vrot.slane %v2305, 4
        %v2308 = vshll.u32 %v2128, 16
        %v2310 = vrot.slane %v2308, 5
        %v2311 = vsel %vm308, %v2306, %v2310
        %v2312 = vshrl.u32 %v2128, 16
        %v2314 = vrot.slane %v2312, 4
        %v2315 = vor.u32 %v2314, %v2310
        %v2316 = vrot.slane %v2315, 4
        %v2318 = vshll.u32 %v2129, 16
        %v2320 = vrot.slane %v2318, 5
        %v2321 = vsel %vm308, %v2316, %v2320
        %s2322 = scalar_lea.vmem %s1, 28
        %v2323 = vld [vmem:[%s2322] sm:$0xf]
        %v2324 = vunpack.c.l.b16 %v2143
        %v2325 = vunpack.c.l.b16 %v2153
        %v2326 = vunpack.c.l.b16 %v2167
        %v2327 = vunpack.c.l.b16 %v2177
        %v2328 = vunpack.c.l.b16 %v2191
        %v2329 = vunpack.c.l.b16 %v2201
        %v2330 = vunpack.c.l.b16 %v2215
        %v2331 = vunpack.c.l.b16 %v2225
        %v2332 = vunpack.c.l.b16 %v2239
        %v2333 = vunpack.c.l.b16 %v2249
        %v2334 = vunpack.c.l.b16 %v2263
        %v2335 = vunpack.c.l.b16 %v2273
        %v2336 = vunpack.c.l.b16 %v2287
        %v2337 = vunpack.c.l.b16 %v2297
        %v2338 = vunpack.c.l.b16 %v2311
        %v2339 = vunpack.c.l.b16 %v2321
        %v2340 = vpack.c.b16 %v2325, %v2324
        %v2341 = vpack.c.b16 %v2327, %v2326
        %v2342 = vpack.c.b16 %v2329, %v2328
        %v2343 = vpack.c.b16 %v2331, %v2330
        %v2344 = vpack.c.b16 %v2333, %v2332
        %v2345 = vpack.c.b16 %v2335, %v2334
        %v2346 = vpack.c.b16 %v2337, %v2336
        %v2347 = vpack.c.b16 %v2339, %v2338
        %v2349 = vsel %vm527, %v2340, 0
        %v2352 = vsel %vm527, %v2341, 0
        %v2355 = vsel %vm527, %v2342, 0
        %v2358 = vsel %vm527, %v2343, 0
        %v2361 = vsel %vm527, %v2344, 0
        %v2364 = vsel %vm527, %v2345, 0
        %v2367 = vsel %vm527, %v2346, 0
        %v2370 = vsel %vm527, %v2347, 0
        %v2373 = vsel %vm552, %v2323, 0
        %2375 = vmatprep.subr.bf16.mxu0 0
        %2376 = vmatpush1.bf16.msra.mxu0 0
        %2377 = vmatprep.subr.bf16.mxu0 0
        %2378 = vmatpush1.bf16.msra.mxu0 0
        %2379 = vmatprep.subr.bf16.mxu0 0
        %2380 = vmatpush1.bf16.msra.mxu0 0
        %2381 = vmatprep.subr.bf16.mxu0 0
        %2382 = vmatpush1.bf16.msra.mxu0 0
        %2383 = vmatprep.subr.bf16.mxu0 0
        %2384 = vmatpush1.bf16.msra.mxu0 0
        %2385 = vmatprep.subr.bf16.mxu0 0
        %2386 = vmatpush1.bf16.msra.mxu0 0
        %2387 = vmatprep.subr.bf16.mxu0 0
        %2388 = vmatpush1.bf16.msra.mxu0 0
        %2389 = vmatprep.subr.bf16.mxu0 0
        %2390 = vmatpush1.bf16.msra.mxu0 %v2373
        %2391 = vmatprep.subr.bf16.mxu0 0
        %2392 = vmatpush2.bf16.msra.mxu0 0
        %2393 = vmatprep.subr.bf16.mxu0 0
        %2394 = vmatpush2.bf16.msra.mxu0 0
        %2395 = vmatprep.subr.bf16.mxu0 0
        %2396 = vmatpush2.bf16.msra.mxu0 0
        %2397 = vmatprep.subr.bf16.mxu0 0
        %2398 = vmatpush2.bf16.msra.mxu0 0
        %2399 = vmatprep.subr.bf16.mxu0 0
        %2400 = vmatpush2.bf16.msra.mxu0 0
        %2401 = vmatprep.subr.bf16.mxu0 0
        %2402 = vmatpush2.bf16.msra.mxu0 0
        %2403 = vmatprep.subr.bf16.mxu0 0
        %2404 = vmatpush2.bf16.msra.mxu0 0
        %2405 = vmatprep.subr.bf16.mxu0 0
        %2406 = vmatpush2.bf16.msra.mxu0 0
        %2407 = vmatprep.mubr.bf16.mxu0 0
        %2408 = vmatmul.mubr.bf16.gmra.mxu0 %v2349
        %v2409 = vpop.f32.mrf.mxu0
        %v2410 = vadd.f32 0.0, %v2409
        %v2411 = vpop.f32.mrf.mxu0
        %v2412 = vpop.f32.mrf.mxu0
        %v2413 = vadd.f32 0.0, %v2412
        %v2414 = vpop.f32.mrf.mxu0
        %2415 = vmatprep.mubr.bf16.mxu0 0
        %2416 = vmatmul.mubr.bf16.gmra.mxu0 %v2352
        %v2417 = vpop.f32.mrf.mxu0
        %v2418 = vadd.f32 0.0, %v2417
        %v2419 = vpop.f32.mrf.mxu0
        %v2420 = vpop.f32.mrf.mxu0
        %v2421 = vadd.f32 0.0, %v2420
        %v2422 = vpop.f32.mrf.mxu0
        %2423 = vmatprep.mubr.bf16.mxu0 0
        %2424 = vmatmul.mubr.bf16.gmra.mxu0 %v2355
        %v2425 = vpop.f32.mrf.mxu0
        %v2426 = vadd.f32 0.0, %v2425
        %v2427 = vpop.f32.mrf.mxu0
        %v2428 = vpop.f32.mrf.mxu0
        %v2429 = vadd.f32 0.0, %v2428
        %v2430 = vpop.f32.mrf.mxu0
        %2431 = vmatprep.mubr.bf16.mxu0 0
        %2432 = vmatmul.mubr.bf16.gmra.mxu0 %v2358
        %v2433 = vpop.f32.mrf.mxu0
        %v2434 = vadd.f32 0.0, %v2433
        %v2435 = vpop.f32.mrf.mxu0
        %v2436 = vpop.f32.mrf.mxu0
        %v2437 = vadd.f32 0.0, %v2436
        %v2438 = vpop.f32.mrf.mxu0
        %2439 = vmatprep.mubr.bf16.mxu0 0
        %2440 = vmatmul.mubr.bf16.gmra.mxu0 %v2361
        %v2441 = vpop.f32.mrf.mxu0
        %v2442 = vadd.f32 0.0, %v2441
        %v2443 = vpop.f32.mrf.mxu0
        %v2444 = vpop.f32.mrf.mxu0
        %v2445 = vadd.f32 0.0, %v2444
        %v2446 = vpop.f32.mrf.mxu0
        %2447 = vmatprep.mubr.bf16.mxu0 0
        %2448 = vmatmul.mubr.bf16.gmra.mxu0 %v2364
        %v2449 = vpop.f32.mrf.mxu0
        %v2450 = vadd.f32 0.0, %v2449
        %v2451 = vpop.f32.mrf.mxu0
        %v2452 = vpop.f32.mrf.mxu0
        %v2453 = vadd.f32 0.0, %v2452
        %v2454 = vpop.f32.mrf.mxu0
        %2455 = vmatprep.mubr.bf16.mxu0 0
        %2456 = vmatmul.mubr.bf16.gmra.mxu0 %v2367
        %v2457 = vpop.f32.mrf.mxu0
        %v2458 = vadd.f32 0.0, %v2457
        %v2459 = vpop.f32.mrf.mxu0
        %v2460 = vpop.f32.mrf.mxu0
        %v2461 = vadd.f32 0.0, %v2460
        %v2462 = vpop.f32.mrf.mxu0
        %2463 = vmatprep.mubr.bf16.mxu0 0
        %2464 = vmatmul.mubr.bf16.gmra.mxu0 %v2370
        %v2465 = vpop.f32.mrf.mxu0
        %v2466 = vadd.f32 0.0, %v2465
        %v2467 = vpop.f32.mrf.mxu0
        %v2468 = vpop.f32.mrf.mxu0
        %v2469 = vadd.f32 0.0, %v2468
        %v2470 = vpop.f32.mrf.mxu0
        %2471 = vdwg.mxu0
        %v2472 = vadd.f32 %v2090, %v2410
        %v2473 = vadd.f32 %v2091, %v2413
        %v2474 = vadd.f32 %v2092, %v2418
        %v2475 = vadd.f32 %v2093, %v2421
        %v2476 = vadd.f32 %v2094, %v2426
        %v2477 = vadd.f32 %v2095, %v2429
        %v2478 = vadd.f32 %v2096, %v2434
        %v2479 = vadd.f32 %v2097, %v2437
        %v2480 = vadd.f32 %v2098, %v2442
        %v2481 = vadd.f32 %v2099, %v2445
        %v2482 = vadd.f32 %v2100, %v2450
        %v2483 = vadd.f32 %v2101, %v2453
        %v2484 = vadd.f32 %v2102, %v2458
        %v2485 = vadd.f32 %v2103, %v2461
        %v2486 = vadd.f32 %v2104, %v2466
        %v2487 = vadd.f32 %v2105, %v2469
        %v2488 = vld [vmem:[%s1907] sm:$0xe]
        %v2489 = vld [vmem:[%s1907 + $0xc] sm:$0xe]
        %v2490 = vld [vmem:[%s1907 + $0x18] sm:$0xe]
        %v2491 = vld [vmem:[%s1907 + $0x24] sm:$0xe]
        %v2492 = vld [vmem:[%s1907 + $0x30] sm:$0xe]
        %v2493 = vld [vmem:[%s1907 + $0x3c] sm:$0xe]
        %v2494 = vld [vmem:[%s1907 + $0x48] sm:$0xe]
        %v2495 = vld [vmem:[%s1907 + $0x54] sm:$0xe]
        %v2520 = vrot.slane %v2488, 5
        %v2521 = vrot.slane %v2520, 4
        %v2522 = vrot.slane %v2107, 5
        %v2523 = vsel %vm843, %v2521, %v2522
        %v2524 = vrot.slane %v2522, 4
        %v2525 = vrot.slane %v2108, 5
        %v2526 = vsel %vm843, %v2524, %v2525
        %v2527 = vrot.slane %v2489, 5
        %v2528 = vrot.slane %v2527, 4
        %v2529 = vrot.slane %v2110, 5
        %v2530 = vsel %vm843, %v2528, %v2529
        %v2531 = vrot.slane %v2529, 4
        %v2532 = vrot.slane %v2111, 5
        %v2533 = vsel %vm843, %v2531, %v2532
        %v2534 = vrot.slane %v2490, 5
        %v2535 = vrot.slane %v2534, 4
        %v2536 = vrot.slane %v2113, 5
        %v2537 = vsel %vm843, %v2535, %v2536
        %v2538 = vrot.slane %v2536, 4
        %v2539 = vrot.slane %v2114, 5
        %v2540 = vsel %vm843, %v2538, %v2539
        %v2541 = vrot.slane %v2491, 5
        %v2542 = vrot.slane %v2541, 4
        %v2543 = vrot.slane %v2116, 5
        %v2544 = vsel %vm843, %v2542, %v2543
        %v2545 = vrot.slane %v2543, 4
        %v2546 = vrot.slane %v2117, 5
        %v2547 = vsel %vm843, %v2545, %v2546
        %v2548 = vrot.slane %v2492, 5
        %v2549 = vrot.slane %v2548, 4
        %v2550 = vrot.slane %v2119, 5
        %v2551 = vsel %vm843, %v2549, %v2550
        %v2552 = vrot.slane %v2550, 4
        %v2553 = vrot.slane %v2120, 5
        %v2554 = vsel %vm843, %v2552, %v2553
        %v2555 = vrot.slane %v2493, 5
        %v2556 = vrot.slane %v2555, 4
        %v2557 = vrot.slane %v2122, 5
        %v2558 = vsel %vm843, %v2556, %v2557
        %v2559 = vrot.slane %v2557, 4
        %v2560 = vrot.slane %v2123, 5
        %v2561 = vsel %vm843, %v2559, %v2560
        %v2562 = vrot.slane %v2494, 5
        %v2563 = vrot.slane %v2562, 4
        %v2564 = vrot.slane %v2125, 5
        %v2565 = vsel %vm843, %v2563, %v2564
        %v2566 = vrot.slane %v2564, 4
        %v2567 = vrot.slane %v2126, 5
        %v2568 = vsel %vm843, %v2566, %v2567
        %v2569 = vrot.slane %v2495, 5
        %v2570 = vrot.slane %v2569, 4
        %v2571 = vrot.slane %v2128, 5
        %v2572 = vsel %vm843, %v2570, %v2571
        %v2573 = vrot.slane %v2571, 4
        %v2574 = vrot.slane %v2129, 5
        %v2575 = vsel %vm843, %v2573, %v2574
        %s2576 = scalar_lea.vmem %s1, 32
        %v2577 = vld [vmem:[%s2576] sm:$0xf]
        %v2578 = vunpack.c.l.b16 %v2523
        %v2579 = vunpack.c.l.b16 %v2526
        %v2580 = vunpack.c.l.b16 %v2530
        %v2581 = vunpack.c.l.b16 %v2533
        %v2582 = vunpack.c.l.b16 %v2537
        %v2583 = vunpack.c.l.b16 %v2540
        %v2584 = vunpack.c.l.b16 %v2544
        %v2585 = vunpack.c.l.b16 %v2547
        %v2586 = vunpack.c.l.b16 %v2551
        %v2587 = vunpack.c.l.b16 %v2554
        %v2588 = vunpack.c.l.b16 %v2558
        %v2589 = vunpack.c.l.b16 %v2561
        %v2590 = vunpack.c.l.b16 %v2565
        %v2591 = vunpack.c.l.b16 %v2568
        %v2592 = vunpack.c.l.b16 %v2572
        %v2593 = vunpack.c.l.b16 %v2575
        %v2594 = vpack.c.b16 %v2579, %v2578
        %v2595 = vpack.c.b16 %v2581, %v2580
        %v2596 = vpack.c.b16 %v2583, %v2582
        %v2597 = vpack.c.b16 %v2585, %v2584
        %v2598 = vpack.c.b16 %v2587, %v2586
        %v2599 = vpack.c.b16 %v2589, %v2588
        %v2600 = vpack.c.b16 %v2591, %v2590
        %v2601 = vpack.c.b16 %v2593, %v2592
        %v2603 = vsel %vm527, %v2594, 0
        %v2606 = vsel %vm527, %v2595, 0
        %v2609 = vsel %vm527, %v2596, 0
        %v2612 = vsel %vm527, %v2597, 0
        %v2615 = vsel %vm527, %v2598, 0
        %v2618 = vsel %vm527, %v2599, 0
        %v2621 = vsel %vm527, %v2600, 0
        %v2624 = vsel %vm527, %v2601, 0
        %v2627 = vsel %vm552, %v2577, 0
        %2629 = vmatprep.subr.bf16.mxu0 0
        %2630 = vmatpush1.bf16.msra.mxu0 0
        %2631 = vmatprep.subr.bf16.mxu0 0
        %2632 = vmatpush1.bf16.msra.mxu0 0
        %2633 = vmatprep.subr.bf16.mxu0 0
        %2634 = vmatpush1.bf16.msra.mxu0 0
        %2635 = vmatprep.subr.bf16.mxu0 0
        %2636 = vmatpush1.bf16.msra.mxu0 0
        %2637 = vmatprep.subr.bf16.mxu0 0
        %2638 = vmatpush1.bf16.msra.mxu0 0
        %2639 = vmatprep.subr.bf16.mxu0 0
        %2640 = vmatpush1.bf16.msra.mxu0 0
        %2641 = vmatprep.subr.bf16.mxu0 0
        %2642 = vmatpush1.bf16.msra.mxu0 0
        %2643 = vmatprep.subr.bf16.mxu0 0
        %2644 = vmatpush1.bf16.msra.mxu0 %v2627
        %2645 = vmatprep.subr.bf16.mxu0 0
        %2646 = vmatpush2.bf16.msra.mxu0 0
        %2647 = vmatprep.subr.bf16.mxu0 0
        %2648 = vmatpush2.bf16.msra.mxu0 0
        %2649 = vmatprep.subr.bf16.mxu0 0
        %2650 = vmatpush2.bf16.msra.mxu0 0
        %2651 = vmatprep.subr.bf16.mxu0 0
        %2652 = vmatpush2.bf16.msra.mxu0 0
        %2653 = vmatprep.subr.bf16.mxu0 0
        %2654 = vmatpush2.bf16.msra.mxu0 0
        %2655 = vmatprep.subr.bf16.mxu0 0
        %2656 = vmatpush2.bf16.msra.mxu0 0
        %2657 = vmatprep.subr.bf16.mxu0 0
        %2658 = vmatpush2.bf16.msra.mxu0 0
        %2659 = vmatprep.subr.bf16.mxu0 0
        %2660 = vmatpush2.bf16.msra.mxu0 0
        %2661 = vmatprep.mubr.bf16.mxu0 0
        %2662 = vmatmul.mubr.bf16.gmra.mxu0 %v2603
        %v2663 = vpop.f32.mrf.mxu0
        %v2664 = vadd.f32 0.0, %v2663
        %v2665 = vpop.f32.mrf.mxu0
        %v2666 = vpop.f32.mrf.mxu0
        %v2667 = vadd.f32 0.0, %v2666
        %v2668 = vpop.f32.mrf.mxu0
        %2669 = vmatprep.mubr.bf16.mxu0 0
        %2670 = vmatmul.mubr.bf16.gmra.mxu0 %v2606
        %v2671 = vpop.f32.mrf.mxu0
        %v2672 = vadd.f32 0.0, %v2671
        %v2673 = vpop.f32.mrf.mxu0
        %v2674 = vpop.f32.mrf.mxu0
        %v2675 = vadd.f32 0.0, %v2674
        %v2676 = vpop.f32.mrf.mxu0
        %2677 = vmatprep.mubr.bf16.mxu0 0
        %2678 = vmatmul.mubr.bf16.gmra.mxu0 %v2609
        %v2679 = vpop.f32.mrf.mxu0
        %v2680 = vadd.f32 0.0, %v2679
        %v2681 = vpop.f32.mrf.mxu0
        %v2682 = vpop.f32.mrf.mxu0
        %v2683 = vadd.f32 0.0, %v2682
        %v2684 = vpop.f32.mrf.mxu0
        %2685 = vmatprep.mubr.bf16.mxu0 0
        %2686 = vmatmul.mubr.bf16.gmra.mxu0 %v2612
        %v2687 = vpop.f32.mrf.mxu0
        %v2688 = vadd.f32 0.0, %v2687
        %v2689 = vpop.f32.mrf.mxu0
        %v2690 = vpop.f32.mrf.mxu0
        %v2691 = vadd.f32 0.0, %v2690
        %v2692 = vpop.f32.mrf.mxu0
        %2693 = vmatprep.mubr.bf16.mxu0 0
        %2694 = vmatmul.mubr.bf16.gmra.mxu0 %v2615
        %v2695 = vpop.f32.mrf.mxu0
        %v2696 = vadd.f32 0.0, %v2695
        %v2697 = vpop.f32.mrf.mxu0
        %v2698 = vpop.f32.mrf.mxu0
        %v2699 = vadd.f32 0.0, %v2698
        %v2700 = vpop.f32.mrf.mxu0
        %2701 = vmatprep.mubr.bf16.mxu0 0
        %2702 = vmatmul.mubr.bf16.gmra.mxu0 %v2618
        %v2703 = vpop.f32.mrf.mxu0
        %v2704 = vadd.f32 0.0, %v2703
        %v2705 = vpop.f32.mrf.mxu0
        %v2706 = vpop.f32.mrf.mxu0
        %v2707 = vadd.f32 0.0, %v2706
        %v2708 = vpop.f32.mrf.mxu0
        %2709 = vmatprep.mubr.bf16.mxu0 0
        %2710 = vmatmul.mubr.bf16.gmra.mxu0 %v2621
        %v2711 = vpop.f32.mrf.mxu0
        %v2712 = vadd.f32 0.0, %v2711
        %v2713 = vpop.f32.mrf.mxu0
        %v2714 = vpop.f32.mrf.mxu0
        %v2715 = vadd.f32 0.0, %v2714
        %v2716 = vpop.f32.mrf.mxu0
        %2717 = vmatprep.mubr.bf16.mxu0 0
        %2718 = vmatmul.mubr.bf16.gmra.mxu0 %v2624
        %v2719 = vpop.f32.mrf.mxu0
        %v2720 = vadd.f32 0.0, %v2719
        %v2721 = vpop.f32.mrf.mxu0
        %v2722 = vpop.f32.mrf.mxu0
        %v2723 = vadd.f32 0.0, %v2722
        %v2724 = vpop.f32.mrf.mxu0
        %2725 = vdwg.mxu0
        %v2726 = vadd.f32 %v2472, %v2664
        %v2727 = vadd.f32 %v2473, %v2667
        %v2728 = vadd.f32 %v2474, %v2672
        %v2729 = vadd.f32 %v2475, %v2675
        %v2730 = vadd.f32 %v2476, %v2680
        %v2731 = vadd.f32 %v2477, %v2683
        %v2732 = vadd.f32 %v2478, %v2688
        %v2733 = vadd.f32 %v2479, %v2691
        %v2734 = vadd.f32 %v2480, %v2696
        %v2735 = vadd.f32 %v2481, %v2699
        %v2736 = vadd.f32 %v2482, %v2704
        %v2737 = vadd.f32 %v2483, %v2707
        %v2738 = vadd.f32 %v2484, %v2712
        %v2739 = vadd.f32 %v2485, %v2715
        %v2740 = vadd.f32 %v2486, %v2720
        %v2741 = vadd.f32 %v2487, %v2723
        %v2742 = vld [vmem:[%s2] sm:$0x1]
        %v2744 = vlaneseq
        %v2745 = vshrl.u32 %v2744, 7
        %v2746 = vsub.s32 0, %v2745
        %v2747 = vrot.slane %v2742, %v2746
        %v2749 = vadd.f32 %v2726, %v2747
        %v2750 = vadd.f32 %v2727, %v2747
        %v2751 = vadd.f32 %v2728, %v2747
        %v2752 = vadd.f32 %v2729, %v2747
        %v2753 = vadd.f32 %v2730, %v2747
        %v2754 = vadd.f32 %v2731, %v2747
        %v2755 = vadd.f32 %v2732, %v2747
        %v2756 = vadd.f32 %v2733, %v2747
        %v2757 = vadd.f32 %v2734, %v2747
        %v2758 = vadd.f32 %v2735, %v2747
        %v2759 = vadd.f32 %v2736, %v2747
        %v2760 = vadd.f32 %v2737, %v2747
        %v2761 = vadd.f32 %v2738, %v2747
        %v2762 = vadd.f32 %v2739, %v2747
        %v2763 = vadd.f32 %v2740, %v2747
        %v2764 = vadd.f32 %v2741, %v2747
        %v2765 = vmax.f32 %v2749, 0.0
        %v2766 = vmax.f32 %v2750, 0.0
        %v2767 = vmax.f32 %v2751, 0.0
        %v2768 = vmax.f32 %v2752, 0.0
        %v2769 = vmax.f32 %v2753, 0.0
        %v2770 = vmax.f32 %v2754, 0.0
        %v2771 = vmax.f32 %v2755, 0.0
        %v2772 = vmax.f32 %v2756, 0.0
        %v2773 = vmax.f32 %v2757, 0.0
        %v2774 = vmax.f32 %v2758, 0.0
        %v2775 = vmax.f32 %v2759, 0.0
        %v2776 = vmax.f32 %v2760, 0.0
        %v2777 = vmax.f32 %v2761, 0.0
        %v2778 = vmax.f32 %v2762, 0.0
        %v2779 = vmax.f32 %v2763, 0.0
        %v2780 = vmax.f32 %v2764, 0.0
        %v2781 = vld [vmem:[%s265] sm:$0x1]
        %v2782 = vadd.f32 %v2765, %v2766
        %v2783 = vadd.f32 %v2782, %v2767
        %v2784 = vadd.f32 %v2783, %v2768
        %v2785 = vadd.f32 %v2784, %v2769
        %v2786 = vadd.f32 %v2785, %v2770
        %v2787 = vadd.f32 %v2786, %v2771
        %v2788 = vadd.f32 %v2787, %v2772
        %v2789 = vadd.f32 %v2788, %v2773
        %v2790 = vadd.f32 %v2789, %v2774
        %v2791 = vadd.f32 %v2790, %v2775
        %v2792 = vadd.f32 %v2791, %v2776
        %v2793 = vadd.f32 %v2792, %v2777
        %v2794 = vadd.f32 %v2793, %v2778
        %v2795 = vadd.f32 %v2794, %v2779
        %v2796 = vadd.f32 %v2795, %v2780
        %v2797 = vrot.slane %v2796, 4
        %v2798 = vadd.f32 %v2796, %v2797
        %v2799 = vrot.slane %v2798, 2
        %v2800 = vadd.f32 %v2798, %v2799
        %v2801 = vrot.slane %v2800, 1
        %v2802 = vadd.f32 %v2800, %v2801
        %v2803 = vadd.f32 %v2781, %v2802
        %2804 = vst [vmem:[%s265] sm:$0x1] %v2803
        %p2805 = scmp.eq.s32.totalorder %s29, 1
        // Predicated region
        $region45: #{fused_conv_pool_fc.1} parent=39 // pred_check
          %p2806 = pneg %p2805
        $region46: #{fused_conv_pool_fc.1} parent=39 // pred_check_branch
          %2808 = sbr.rel (%p2806) target = $region48
        $region47: #{fused_conv_pool_fc.1} parent=39 // pred_region
          %v2809 = vld [vmem:[%s265] sm:$0x1]
          %v2810 = vmul.f32 %v2809, 0.00390625
          %2811 = vst [vmem:[%s265] sm:$0x1] %v2810
          %v2812 = vld [vmem:[%s3] sm:$0xff]
          %v2813 = vld [vmem:[%s3 + $0x8] sm:$0xff]
          %v2814 = vld [vmem:[%s3 + $0x10] sm:$0xff]
          %v2815 = vld [vmem:[%s3 + $0x18] sm:$0xff]
          %v2816 = vld [vmem:[%s3 + $0x20] sm:$0xff]
          %v2817 = vld [vmem:[%s3 + $0x28] sm:$0xff]
          %v2818 = vld [vmem:[%s3 + $0x30] sm:$0xff]
          %v2819 = vld [vmem:[%s3 + $0x38] sm:$0xff]
          %v2820 = vld [vmem:[%s3 + $0x40] sm:$0xff]
          %v2821 = vld [vmem:[%s3 + $0x48] sm:$0xff]
          %v2822 = vld [vmem:[%s3 + $0x50] sm:$0xff]
          %v2823 = vld [vmem:[%s3 + $0x58] sm:$0xff]
          %v2824 = vld [vmem:[%s3 + $0x60] sm:$0xff]
          %v2825 = vld [vmem:[%s3 + $0x68] sm:$0xff]
          %v2826 = vld [vmem:[%s3 + $0x70] sm:$0xff]
          %v2827 = vld [vmem:[%s3 + $0x78] sm:$0xff]
          %v2828 = vld [vmem:[%s4] sm:$0x1]
          %2829 = vmatprep.subr.mxu0 0.0
          %2830 = vmatpush1.msra.mxu0 %v2827
          %2831 = vmatprep.subr.mxu0 0.0
          %2832 = vmatpush1.msra.mxu0 %v2826
          %2833 = vmatprep.subr.mxu0 0.0
          %2834 = vmatpush1.msra.mxu0 %v2825
          %2835 = vmatprep.subr.mxu0 0.0
          %2836 = vmatpush1.msra.mxu0 %v2824
          %2837 = vmatprep.subr.mxu0 0.0
          %2838 = vmatpush1.msra.mxu0 %v2823
          %2839 = vmatprep.subr.mxu0 0.0
          %2840 = vmatpush1.msra.mxu0 %v2822
          %2841 = vmatprep.subr.mxu0 0.0
          %2842 = vmatpush1.msra.mxu0 %v2821
          %2843 = vmatprep.subr.mxu0 0.0
          %2844 = vmatpush1.msra.mxu0 %v2820
          %2845 = vmatprep.subr.mxu0 0.0
          %2846 = vmatpush1.msra.mxu0 %v2819
          %2847 = vmatprep.subr.mxu0 0.0
          %2848 = vmatpush1.msra.mxu0 %v2818
          %2849 = vmatprep.subr.mxu0 0.0
          %2850 = vmatpush1.msra.mxu0 %v2817
          %2851 = vmatprep.subr.mxu0 0.0
          %2852 = vmatpush1.msra.mxu0 %v2816
          %2853 = vmatprep.subr.mxu0 0.0
          %2854 = vmatpush1.msra.mxu0 %v2815
          %2855 = vmatprep.subr.mxu0 0.0
          %2856 = vmatpush1.msra.mxu0 %v2814
          %2857 = vmatprep.subr.mxu0 0.0
          %2858 = vmatpush1.msra.mxu0 %v2813
          %2859 = vmatprep.subr.mxu0 0.0
          %2860 = vmatpush1.msra.mxu0 %v2812
          %2861 = vmatprep.subr.mxu0 0.0
          %2862 = vmatpush2.msra.mxu0 0.0
          %2863 = vmatprep.subr.mxu0 0.0
          %2864 = vmatpush2.msra.mxu0 0.0
          %2865 = vmatprep.subr.mxu0 0.0
          %2866 = vmatpush2.msra.mxu0 0.0
          %2867 = vmatprep.subr.mxu0 0.0
          %2868 = vmatpush2.msra.mxu0 0.0
          %2869 = vmatprep.subr.mxu0 0.0
          %2870 = vmatpush2.msra.mxu0 0.0
          %2871 = vmatprep.subr.mxu0 0.0
          %2872 = vmatpush2.msra.mxu0 0.0
          %2873 = vmatprep.subr.mxu0 0.0
          %2874 = vmatpush2.msra.mxu0 0.0
          %2875 = vmatprep.subr.mxu0 0.0
          %2876 = vmatpush2.msra.mxu0 0.0
          %2877 = vmatprep.subr.mxu0 0.0
          %2878 = vmatpush2.msra.mxu0 0.0
          %2879 = vmatprep.subr.mxu0 0.0
          %2880 = vmatpush2.msra.mxu0 0.0
          %2881 = vmatprep.subr.mxu0 0.0
          %2882 = vmatpush2.msra.mxu0 0.0
          %2883 = vmatprep.subr.mxu0 0.0
          %2884 = vmatpush2.msra.mxu0 0.0
          %2885 = vmatprep.subr.mxu0 0.0
          %2886 = vmatpush2.msra.mxu0 0.0
          %2887 = vmatprep.subr.mxu0 0.0
          %2888 = vmatpush2.msra.mxu0 0.0
          %2889 = vmatprep.subr.mxu0 0.0
          %2890 = vmatpush2.msra.mxu0 0.0
          %2891 = vmatprep.subr.mxu0 0.0
          %2892 = vmatpush2.msra.mxu0 0.0
          %2893 = vmatprep.mubr.f32.mxu0 0.0
          %2894 = vmatmul.mubr.f32.gmra.mxu0 %v2810
          %v2895 = vpop.f32.mrf.mxu0
          %v2896 = vadd.f32 %v2828, %v2895
          %v2897 = vpop.f32.mrf.mxu0
          %2898 = vdwg.mxu0
          %2899 = vst [vmem:[%s259] sm:$0x1] %v2896
        $region48: #{fused_conv_pool_fc.1} parent=39 // pred_fallthru
          _
        %s2900 = sand.u32 %s154, 1
        %s2901 = scalar_lea.sflag [#allocation3], %s2900
        %s2902 = sand.u32 %s154, 1
        %s2903 = scalar_lea.vmem [#allocation2], %s2902
        %s2904 = sand.u32 %s180, 1
        %s2905 = scalar_lea.sflag [#allocation5], %s2904
        %s2906 = sand.u32 %s180, 1
        %s2907 = scalar_lea.vmem [#allocation4], %s2906
        // Predicated region
        $region49: #{fused_conv_pool_fc.1} parent=39 // pred_check
          %p2908 = pneg %p164
        $region50: #{fused_conv_pool_fc.1} parent=39 // pred_check_branch
          %2910 = sbr.rel (%p2908) target = $region52
        $region51: #{fused_conv_pool_fc.1} parent=39 // pred_region
          %s2912 = ssub.s32 16, 16
          %2913 = vsyncadd %s2901, %s2912
          %s2914 = smul.addr %s28, 16
          %s2915 = scalar_lea.hbm %s5, %s2914
          %s2917 = sshll.u32 %s2903, 4
          %s2918 = int_to_ptr.vmem [resolvable:$true] %s2917
          %2920 = dma.vmem_to_hbm [thread:$0]  %s2918, 16, %s2915, %s2901
        $region52: #{fused_conv_pool_fc.1} parent=39 // pred_fallthru
          _
        // Predicated region
        $region53: #{fused_conv_pool_fc.1} parent=39 // pred_check
          %p2921 = pneg %p190
        $region54: #{fused_conv_pool_fc.1} parent=39 // pred_check_branch
          %2923 = sbr.rel (%p2921) target = $region56
        $region55: #{fused_conv_pool_fc.1} parent=39 // pred_region
          %s2925 = ssub.s32 16, 16
          %2926 = vsyncadd %s2905, %s2925
          %s2927 = smul.addr %s28, 16
          %s2928 = scalar_lea.hbm %s6, %s2927
          %s2930 = sshll.u32 %s2907, 4
          %s2931 = int_to_ptr.vmem [resolvable:$true] %s2930
          %2933 = dma.vmem_to_hbm [thread:$0]  %s2931, 16, %s2928, %s2905
        $region56: #{fused_conv_pool_fc.1} parent=39 // pred_fallthru
          _
      $region40: #{fused_conv_pool_fc.1} parent=5 // pred_fallthru
        _
      %p2934 = scmp.le.s32.totalorder 2, %s19
      // Predicated region
      $region57: #{fused_conv_pool_fc.1} parent=5 // pred_check
        %p2935 = pneg %p2934
      $region58: #{fused_conv_pool_fc.1} parent=5 // pred_check_branch
        %2937 = sbr.rel (%p2935) target = $region60
      $region59: #{fused_conv_pool_fc.1} parent=5 // pred_region
        %s2938 = ssub.s32 %s19, 2
        // Predicated region
        $region61: #{fused_conv_pool_fc.1} parent=59 // pred_check
          %p2939 = pneg %p170
        $region62: #{fused_conv_pool_fc.1} parent=59 // pred_check_branch
          %2941 = sbr.rel (%p2939) target = $region64
        $region63: #{fused_conv_pool_fc.1} parent=59 // pred_region
          %s2942 = sand.u32 %s155, 1
          %s2943 = scalar_lea.sflag [#allocation3], %s2942
          %s2944 = sand.u32 %s155, 1
          %s2945 = scalar_lea.vmem [#allocation2], %s2944
          %2946 = dma.done %s2943, 16
        $region64: #{fused_conv_pool_fc.1} parent=59 // pred_fallthru
          _
        // Predicated region
        $region65: #{fused_conv_pool_fc.1} parent=59 // pred_check
          %p2947 = pneg %p196
        $region66: #{fused_conv_pool_fc.1} parent=59 // pred_check_branch
          %2949 = sbr.rel (%p2947) target = $region68
        $region67: #{fused_conv_pool_fc.1} parent=59 // pred_region
          %s2950 = sand.u32 %s181, 1
          %s2951 = scalar_lea.sflag [#allocation5], %s2950
          %s2952 = sand.u32 %s181, 1
          %s2953 = scalar_lea.vmem [#allocation4], %s2952
          %2954 = dma.done %s2951, 16
        $region68: #{fused_conv_pool_fc.1} parent=59 // pred_fallthru
          _
      $region60: #{fused_conv_pool_fc.1} parent=5 // pred_fallthru
        _
    $region6: #{fused_conv_pool_fc.1} parent=1 // loop_footer
      %s23 = sadd.s32 1, %s19
    $region7: #{fused_conv_pool_fc.1} parent=1 // loop_footer_branch
      %18 = sbr.rel target = $region3
    $region8: #{fused_conv_pool_fc.1} parent=1 // loop_exit
      _
    %2955 = vsyncpa [#allocation3], 1
    %s2956 = scalar_lea.sflag [#allocation3], 1
    %2957 = vsyncpa %s2956, 1
    %2958 = vsyncpa [#allocation5], 1
    %s2959 = scalar_lea.sflag [#allocation5], 1
    %2960 = vsyncpa %s2959, 1

</llo_original>
